<compile_context>
chip_gen: v5e
topology: v5e:2x2
jax: 0.10.0
libtpu: 0.0.40
codegen_flags: <defaults>
</compile_context>

<pallas_src>
import functools

import jax
import jax.numpy as jnp
from jax.experimental import pallas as pl
from jax.experimental.pallas import tpu as pltpu


def _sigmoid(x):
    # One EUP op instead of exp + reciprocal; mathematically exact.
    return 0.5 * jnp.tanh(0.5 * x) + 0.5


def _blstm_recurrence_kernel(gx_ref, whh_ref, out_ref, h_ref, c_ref, *, chunk_axis):
    # gx_ref : (Dblk, Tc, B, 4H) bf16  precomputed x @ W_ih^T + b for this time
    #                                   chunk (backward dir already time-flipped,
    #                                   so every direction walks forward).
    # whh_ref: (Dblk, H, 4H)     bf16  hidden->gates weights.
    # out_ref: (Dblk, Tc, B, H)  bf16  per-direction hidden states (local time).
    # h_ref  : (Dblk, B, H)      bf16  recurrent h carry (VMEM scratch).
    # c_ref  : (Dblk, B, H)      f32   recurrent c carry (VMEM scratch).
    ndir = gx_ref.shape[0]
    chunk = gx_ref.shape[1]
    H = h_ref.shape[2]

    @pl.when(pl.program_id(chunk_axis) == 0)
    def _():
        h_ref[...] = jnp.zeros_like(h_ref)
        c_ref[...] = jnp.zeros_like(c_ref)

    # Hoist the weights once per chunk (constant block index across chunks).
    w_hh = [whh_ref[d] for d in range(ndir)]  # each (H, 4H) bf16

    def step(s, carry):
        # With the backward gx pre-flipped in Stage 1, both directions walk the
        # chunk forward: no per-step select on the serial address chain.
        for d in range(ndir):
            gx_t = gx_ref[d, pl.ds(s, 1)][0].astype(jnp.float32)           # (B, 4H)
            gates = gx_t + jnp.dot(h_ref[d], w_hh[d],
                                   preferred_element_type=jnp.float32)     # (B, 4H)
            # PyTorch gate order: i, f, g, o.
            i_g = _sigmoid(gates[:, 0 * H:1 * H])
            f_g = _sigmoid(gates[:, 1 * H:2 * H])
            o_g = _sigmoid(gates[:, 3 * H:4 * H])
            g_g = jnp.tanh(gates[:, 2 * H:3 * H])
            c_new = f_g * c_ref[d] + i_g * g_g
            h_new = o_g * jnp.tanh(c_new)
            c_ref[d] = c_new
            h_b16 = h_new.astype(jnp.bfloat16)
            h_ref[d] = h_b16                                  # bf16 carry: feeds next matmul directly
            out_ref[d, pl.ds(s, 1)] = h_b16[None]
        return carry

    jax.lax.fori_loop(0, chunk, step, 0, unroll=min(chunk, 8))


def _pick_time_chunk(T, B, H, out_bytes=2, budget_bytes=8 << 20, max_chunk=256):
    """Timesteps per grid step, sized from a VMEM budget (double-buffered)."""
    # Per timestep (both directions): gx (bf16) + out buffers, double-buffered.
    per_step = 2 * (2 * B * (4 * H) * 2 + 2 * B * H * out_bytes)
    tc = max(1, min(max_chunk, T, budget_bytes // max(per_step, 1)))
    if tc >= 8:
        tc = (tc // 8) * 8
    return tc


def _num_tensorcores_per_chip():
    try:
        kind = jax.devices()[0].device_kind.lower()
    except Exception:
        return 1
    return 2 if ("v7" in kind or "7x" in kind) else 1


@functools.partial(jax.jit, static_argnums=(9,))
def _blstm_forward_impl(x, w_ih_f, w_hh_f, b_ih_f, b_hh_f,
                        w_ih_r, w_hh_r, b_ih_r, b_hh_r, fuse_directions):
    B, T, I = x.shape
    H = w_hh_f.shape[1]
    G = 4 * H

    Tc = _pick_time_chunk(T, B, H)
    T_pad = -(-T // Tc) * Tc
    n_chunks = T_pad // Tc

    # ---- Stage 1: hoisted input projection (one big bf16 MXU GEMM).
    w_ih = jnp.stack([w_ih_f, w_ih_r]).astype(jnp.bfloat16)                   # (2, 4H, I)
    bias = jnp.stack([b_ih_f + b_hh_f, b_ih_r + b_hh_r]).astype(jnp.float32)  # (2, 4H)
    gx = jnp.einsum("bti,dgi->dtbg", x.astype(jnp.bfloat16), w_ih,
                    preferred_element_type=jnp.float32)                       # (2, T, B, 4H)
    gx = (gx + bias[:, None, None, :]).astype(jnp.bfloat16)
    # Pre-flip the backward direction along time so the kernel always walks
    # forward; pad the (already flipped) time axis so padded steps come LAST in
    # every direction's local walk (their outputs are discarded).
    gx = jnp.stack([gx[0], gx[1, ::-1]])
    if T_pad != T:
        gx = jnp.pad(gx, ((0, 0), (0, T_pad - T), (0, 0), (0, 0)))

    whh = jnp.stack([w_hh_f.T, w_hh_r.T]).astype(jnp.bfloat16)                # (2, H, 4H)

    # ---- Stage 2: Pallas recurrence.
    if fuse_directions:
        # Single-TC chips (v5e / v6e): interleave the two independent chains in
        # every grid step to hide per-step matmul/EUP latency.
        grid = (n_chunks,)
        kernel = functools.partial(_blstm_recurrence_kernel, chunk_axis=0)
        in_specs = [
            pl.BlockSpec((2, Tc, B, G), lambda c: (0, c, 0, 0)),       # gx chunk, both dirs
            pl.BlockSpec((2, H, G), lambda c: (0, 0, 0)),              # W_hh (const over c)
        ]
        out_specs = pl.BlockSpec((2, Tc, B, H), lambda c: (0, c, 0, 0))
        scratch = [pltpu.VMEM((2, B, H), jnp.bfloat16),                # h carry
                   pltpu.VMEM((2, B, H), jnp.float32)]                 # c carry
        dims = ("arbitrary",)
    else:
        # v7x: direction axis "parallel" -> one recurrence per TensorCore,
        # each core with its own h/c scratch.
        grid = (2, n_chunks)
        kernel = functools.partial(_blstm_recurrence_kernel, chunk_axis=1)
        in_specs = [
            pl.BlockSpec((1, Tc, B, G), lambda d, c: (d, c, 0, 0)),
            pl.BlockSpec((1, H, G), lambda d, c: (d, 0, 0)),
        ]
        out_specs = pl.BlockSpec((1, Tc, B, H), lambda d, c: (d, c, 0, 0))
        scratch = [pltpu.VMEM((1, B, H), jnp.bfloat16),
                   pltpu.VMEM((1, B, H), jnp.float32)]
        dims = ("parallel", "arbitrary")

    out2 = pl.pallas_call(
        kernel,
        out_shape=jax.ShapeDtypeStruct((2, T_pad, B, H), jnp.bfloat16),
        grid_spec=pltpu.PrefetchScalarGridSpec(
            num_scalar_prefetch=0,
            grid=grid,
            in_specs=in_specs,
            out_specs=out_specs,
            scratch_shapes=scratch,
        ),
        compiler_params=pltpu.CompilerParams(
            dimension_semantics=dims,
            # Explicit scoped-VMEM limit: safe on every generation
            # (v5e default is only 16 MiB; v7x has 64 MiB physical per TC).
            vmem_limit_bytes=32 * 1024 * 1024,
        ),
    )(gx, whh)                                                         # (2, T_pad, B, H) bf16

    # Epilogue: drop padding, un-flip the backward direction, fwd + bwd sum in
    # f32 and back to batch-first (B, T, H) — XLA fuses this into one pass.
    fwd = out2[0, :T].astype(jnp.float32)
    bwd = out2[1, :T][::-1].astype(jnp.float32)
    return jnp.transpose(fwd + bwd, (1, 0, 2))


def blstm_forward(x, w_ih_f, w_hh_f, b_ih_f, b_hh_f,
                  w_ih_r, w_hh_r, b_ih_r, b_hh_r, fuse_directions=None):
    """x: (B, T, I) batch-first, like the PyTorch module. Returns (B, T, H) f32."""
    if fuse_directions is None:
        fuse_directions = _num_tensorcores_per_chip() < 2
    return _blstm_forward_impl(x, w_ih_f, w_hh_f, b_ih_f, b_hh_f,
                               w_ih_r, w_hh_r, b_ih_r, b_hh_r,
                               bool(fuse_directions))


# ----------------------------- pure-JAX reference -----------------------------
def _lstm_ref_one_dir(x, w_ih, w_hh, b, reverse):
    """f32 reference LSTM (PyTorch gate order i, f, g, o). x: (B, T, I)."""
    B, T, I = x.shape
    H = w_hh.shape[1]

    def step(carry, x_t):
        h, c = carry
        gates = x_t @ w_ih.T + h @ w_hh.T + b
        i = jax.nn.sigmoid(gates[:, 0 * H:1 * H])
        f = jax.nn.sigmoid(gates[:, 1 * H:2 * H])
        g = jnp.tanh(gates[:, 2 * H:3 * H])
        o = jax.nn.sigmoid(gates[:, 3 * H:4 * H])
        c = f * c + i * g
        h = o * jnp.tanh(c)
        return (h, c), h

    xs = jnp.swapaxes(x, 0, 1)
    if reverse:
        xs = xs[::-1]
    (_, _), hs = jax.lax.scan(step, (jnp.zeros((B, H)), jnp.zeros((B, H))), xs)
    if reverse:
        hs = hs[::-1]
    return jnp.swapaxes(hs, 0, 1)


def blstm_reference(x, w_ih_f, w_hh_f, b_ih_f, b_hh_f,
                    w_ih_r, w_hh_r, b_ih_r, b_hh_r):
    fwd = _lstm_ref_one_dir(x, w_ih_f, w_hh_f, b_ih_f + b_hh_f, reverse=False)
    bwd = _lstm_ref_one_dir(x, w_ih_r, w_hh_r, b_ih_r + b_hh_r, reverse=True)
    return fwd + bwd


if __name__ == "__main__":
    # Small shapes consistent with the module: batch=2, seq=8, input=16, hidden=32.
    B, T, I, H = 2, 8, 16, 32
    G = 4 * H

    key = jax.random.PRNGKey(0)
    ks = jax.random.split(key, 9)
    scale = 1.0 / jnp.sqrt(jnp.float32(H))  # PyTorch LSTM default init range

    x = jax.random.normal(ks[0], (B, T, I), dtype=jnp.float32)
    w_ih_f = jax.random.uniform(ks[1], (G, I), minval=-scale, maxval=scale)
    w_hh_f = jax.random.uniform(ks[2], (G, H), minval=-scale, maxval=scale)
    b_ih_f = jax.random.uniform(ks[3], (G,), minval=-scale, maxval=scale)
    b_hh_f = jax.random.uniform(ks[4], (G,), minval=-scale, maxval=scale)
    w_ih_r = jax.random.uniform(ks[5], (G, I), minval=-scale, maxval=scale)
    w_hh_r = jax.random.uniform(ks[6], (G, H), minval=-scale, maxval=scale)
    b_ih_r = jax.random.uniform(ks[7], (G,), minval=-scale, maxval=scale)
    b_hh_r = jax.random.uniform(ks[8], (G,), minval=-scale, maxval=scale)

    params = (w_ih_f, w_hh_f, b_ih_f, b_hh_f, w_ih_r, w_hh_r, b_ih_r, b_hh_r)

    ref = blstm_reference(x, *params)

    # Exercise both layouts (direction-fused for single-TC chips, and the
    # direction-parallel megacore layout) to validate correctness of each.
    for fuse in (True, False):
        out = jax.block_until_ready(blstm_forward(x, *params, fuse_directions=fuse))
        assert out.shape == (B, T, H), out.shape
        max_err = float(jnp.max(jnp.abs(out - ref)))
        # bf16 matmul operands / bf16 h carry (f32 cell state & accumulation)
        # -> loosened tolerance vs the f32 reference.
        assert jnp.allclose(out, ref, atol=5e-2, rtol=5e-2), \
            f"fuse={fuse} max err {max_err}"

    # Default path (auto-selected by chip generation).
    out = jax.block_until_ready(blstm_forward(x, *params))
    assert out.shape == (B, T, H)

    print("KERNEL_OK")
</pallas_src>

<mosaic_0001>
module attributes {stable_mosaic.version = 11 : i64} {
  func.func @_blstm_recurrence_kernel(%arg0: i32, %arg1: memref<2x8x2x128xbf16, #tpu.memory_space<vmem>>, %arg2: memref<2x32x128xbf16, #tpu.memory_space<vmem>>, %arg3: memref<2x8x2x32xbf16, #tpu.memory_space<vmem>>, %arg4: memref<2x2x32xbf16, #tpu.memory_space<vmem>>, %arg5: memref<2x2x32xf32, #tpu.memory_space<vmem>>) attributes {dimension_semantics = [#tpu.dimension_semantics<arbitrary>], iteration_bounds = array<i64: 1>, scalar_prefetch = 0 : i64, scratch_operands = 2 : i64, tpu.core_type = #tpu.core_type<tc>, window_params = [{transform_indices = @transform_0, window_bounds = array<i64: 2, 8, 2, 128>}, {pipeline_mode = #tpu.pipeline_mode<synchronous>, transform_indices = @transform_1, window_bounds = array<i64: 2, 32, 128>}, {transform_indices = @transform_2, window_bounds = array<i64: 2, 8, 2, 32>}]} {
    %c0_i32 = arith.constant 0 : i32
    %0 = arith.cmpi eq, %arg0, %c0_i32 : i32
    %1 = arith.extui %0 : i1 to i32
    %c0_i32_0 = arith.constant 0 : i32
    %2 = arith.cmpi ne, %1, %c0_i32_0 : i32
    scf.if %2 {
      %cst_453 = arith.constant 0.000000e+00 : bf16
      %871 = vector.broadcast %cst_453 : bf16 to vector<2x2x32xbf16>
      %c0_454 = arith.constant 0 : index
      %c0_455 = arith.constant 0 : index
      %c0_456 = arith.constant 0 : index
      %872 = vector.load %arg4[%c0_454, %c0_455, %c0_456] : memref<2x2x32xbf16, #tpu.memory_space<vmem>>, vector<2x2x32xbf16>
      tpu.vector_store %arg4[%c0_454, %c0_455, %c0_456], %871 {strides = array<i32>} : memref<2x2x32xbf16, #tpu.memory_space<vmem>>, vector<2x2x32xbf16>,
      %cst_457 = arith.constant 0.000000e+00 : f32
      %873 = vector.broadcast %cst_457 : f32 to vector<2x2x32xf32>
      %c0_458 = arith.constant 0 : index
      %c0_459 = arith.constant 0 : index
      %c0_460 = arith.constant 0 : index
      %874 = vector.load %arg5[%c0_458, %c0_459, %c0_460] : memref<2x2x32xf32, #tpu.memory_space<vmem>>, vector<2x2x32xf32>
      tpu.vector_store %arg5[%c0_458, %c0_459, %c0_460], %873 {strides = array<i32>} : memref<2x2x32xf32, #tpu.memory_space<vmem>>, vector<2x2x32xf32>,
    } else {
    }
    %c0 = arith.constant 0 : index
    %c0_1 = arith.constant 0 : index
    %c0_2 = arith.constant 0 : index
    %3 = vector.load %arg2[%c0, %c0_1, %c0_2] : memref<2x32x128xbf16, #tpu.memory_space<vmem>>, vector<1x32x128xbf16>
    %4 = vector.shape_cast %3 : vector<1x32x128xbf16> to vector<32x128xbf16>
    %c1 = arith.constant 1 : index
    %c0_3 = arith.constant 0 : index
    %c0_4 = arith.constant 0 : index
    %5 = vector.load %arg2[%c1, %c0_3, %c0_4] : memref<2x32x128xbf16, #tpu.memory_space<vmem>>, vector<1x32x128xbf16>
    %6 = vector.shape_cast %5 : vector<1x32x128xbf16> to vector<32x128xbf16>
    %c0_i32_5 = arith.constant 0 : i32
    %c0_6 = arith.constant 0 : index
    %7 = arith.index_cast %c0_i32_5 : i32 to index
    %c0_7 = arith.constant 0 : index
    %c0_8 = arith.constant 0 : index
    %8 = vector.load %arg1[%c0_6, %7, %c0_7, %c0_8] : memref<2x8x2x128xbf16, #tpu.memory_space<vmem>>, vector<1x1x2x128xbf16>
    %9 = vector.shape_cast %8 : vector<1x1x2x128xbf16> to vector<1x2x128xbf16>
    %10 = vector.shape_cast %9 : vector<1x2x128xbf16> to vector<2x128xbf16>
    %11 = arith.extf %10 : vector<2x128xbf16> to vector<2x128xf32>
    %c0_9 = arith.constant 0 : index
    %c0_10 = arith.constant 0 : index
    %c0_11 = arith.constant 0 : index
    %12 = vector.load %arg4[%c0_9, %c0_10, %c0_11] : memref<2x2x32xbf16, #tpu.memory_space<vmem>>, vector<1x2x32xbf16>
    %13 = vector.shape_cast %12 : vector<1x2x32xbf16> to vector<2x32xbf16>
    %cst = arith.constant dense<0.000000e+00> : vector<2x128xf32>
    %14 = tpu.matmul %13, %4, %cst {dimension_numbers = #tpu.dot_dimension_numbers<[1], [0], [0], [1], [0, 0, 1, 1], [], []>} : vector<2x32xbf16>, vector<32x128xbf16>, vector<2x128xf32> -> vector<2x128xf32>
    %15 = arith.addf %11, %14 : vector<2x128xf32>
    %16 = vector.extract_strided_slice %15 {offsets = [0, 0], sizes = [2, 32], strides = [1, 1]} : vector<2x128xf32> to vector<2x32xf32>
    %cst_12 = arith.constant 5.000000e-01 : f32
    %17 = vector.broadcast %cst_12 : f32 to vector<2x32xf32>
    %18 = arith.mulf %17, %16 : vector<2x32xf32>
    %19 = math.tanh %18 : vector<2x32xf32>
    %cst_13 = arith.constant 5.000000e-01 : f32
    %20 = vector.broadcast %cst_13 : f32 to vector<2x32xf32>
    %21 = arith.mulf %20, %19 : vector<2x32xf32>
    %cst_14 = arith.constant 5.000000e-01 : f32
    %22 = vector.broadcast %cst_14 : f32 to vector<2x32xf32>
    %23 = arith.addf %21, %22 : vector<2x32xf32>
    %24 = vector.extract_strided_slice %15 {offsets = [0, 32], sizes = [2, 32], strides = [1, 1]} : vector<2x128xf32> to vector<2x32xf32>
    %cst_15 = arith.constant 5.000000e-01 : f32
    %25 = vector.broadcast %cst_15 : f32 to vector<2x32xf32>
    %26 = arith.mulf %25, %24 : vector<2x32xf32>
    %27 = math.tanh %26 : vector<2x32xf32>
    %cst_16 = arith.constant 5.000000e-01 : f32
    %28 = vector.broadcast %cst_16 : f32 to vector<2x32xf32>
    %29 = arith.mulf %28, %27 : vector<2x32xf32>
    %cst_17 = arith.constant 5.000000e-01 : f32
    %30 = vector.broadcast %cst_17 : f32 to vector<2x32xf32>
    %31 = arith.addf %29, %30 : vector<2x32xf32>
    %32 = vector.extract_strided_slice %15 {offsets = [0, 96], sizes = [2, 32], strides = [1, 1]} : vector<2x128xf32> to vector<2x32xf32>
    %cst_18 = arith.constant 5.000000e-01 : f32
    %33 = vector.broadcast %cst_18 : f32 to vector<2x32xf32>
    %34 = arith.mulf %33, %32 : vector<2x32xf32>
    %35 = math.tanh %34 : vector<2x32xf32>
    %cst_19 = arith.constant 5.000000e-01 : f32
    %36 = vector.broadcast %cst_19 : f32 to vector<2x32xf32>
    %37 = arith.mulf %36, %35 : vector<2x32xf32>
    %cst_20 = arith.constant 5.000000e-01 : f32
    %38 = vector.broadcast %cst_20 : f32 to vector<2x32xf32>
    %39 = arith.addf %37, %38 : vector<2x32xf32>
    %40 = vector.extract_strided_slice %15 {offsets = [0, 64], sizes = [2, 32], strides = [1, 1]} : vector<2x128xf32> to vector<2x32xf32>
    %41 = math.tanh %40 : vector<2x32xf32>
    %c0_21 = arith.constant 0 : index
    %c0_22 = arith.constant 0 : index
    %c0_23 = arith.constant 0 : index
    %42 = vector.load %arg5[%c0_21, %c0_22, %c0_23] : memref<2x2x32xf32, #tpu.memory_space<vmem>>, vector<1x2x32xf32>
    %43 = vector.shape_cast %42 : vector<1x2x32xf32> to vector<2x32xf32>
    %44 = arith.mulf %31, %43 : vector<2x32xf32>
    %45 = arith.mulf %23, %41 : vector<2x32xf32>
    %46 = arith.addf %44, %45 : vector<2x32xf32>
    %47 = math.tanh %46 : vector<2x32xf32>
    %48 = arith.mulf %39, %47 : vector<2x32xf32>
    %c0_24 = arith.constant 0 : index
    %c0_25 = arith.constant 0 : index
    %c0_26 = arith.constant 0 : index
    %49 = vector.load %arg5[%c0_24, %c0_25, %c0_26] : memref<2x2x32xf32, #tpu.memory_space<vmem>>, vector<1x2x32xf32>
    %50 = vector.shape_cast %49 : vector<1x2x32xf32> to vector<2x32xf32>
    %51 = vector.shape_cast %46 : vector<2x32xf32> to vector<1x2x32xf32>
    tpu.vector_store %arg5[%c0_24, %c0_25, %c0_26], %51 {strides = array<i32>} : memref<2x2x32xf32, #tpu.memory_space<vmem>>, vector<1x2x32xf32>,
    %52 = arith.truncf %48 : vector<2x32xf32> to vector<2x32xbf16>
    %c0_27 = arith.constant 0 : index
    %c0_28 = arith.constant 0 : index
    %c0_29 = arith.constant 0 : index
    %53 = vector.load %arg4[%c0_27, %c0_28, %c0_29] : memref<2x2x32xbf16, #tpu.memory_space<vmem>>, vector<1x2x32xbf16>
    %54 = vector.shape_cast %53 : vector<1x2x32xbf16> to vector<2x32xbf16>
    %55 = vector.shape_cast %52 : vector<2x32xbf16> to vector<1x2x32xbf16>
    tpu.vector_store %arg4[%c0_27, %c0_28, %c0_29], %55 {strides = array<i32>} : memref<2x2x32xbf16, #tpu.memory_space<vmem>>, vector<1x2x32xbf16>,
    %56 = vector.shape_cast %52 : vector<2x32xbf16> to vector<1x2x32xbf16>
    %c0_30 = arith.constant 0 : index
    %57 = arith.index_cast %c0_i32_5 : i32 to index
    %c0_31 = arith.constant 0 : index
    %c0_32 = arith.constant 0 : index
    %58 = vector.load %arg3[%c0_30, %57, %c0_31, %c0_32] : memref<2x8x2x32xbf16, #tpu.memory_space<vmem>>, vector<1x1x2x32xbf16>
    %59 = vector.shape_cast %58 : vector<1x1x2x32xbf16> to vector<1x2x32xbf16>
    %60 = vector.shape_cast %56 : vector<1x2x32xbf16> to vector<1x1x2x32xbf16>
    tpu.vector_store %arg3[%c0_30, %57, %c0_31, %c0_32], %60 {strides = array<i32>} : memref<2x8x2x32xbf16, #tpu.memory_space<vmem>>, vector<1x1x2x32xbf16>,
    %c1_33 = arith.constant 1 : index
    %61 = arith.index_cast %c0_i32_5 : i32 to index
    %c0_34 = arith.constant 0 : index
    %c0_35 = arith.constant 0 : index
    %62 = vector.load %arg1[%c1_33, %61, %c0_34, %c0_35] : memref<2x8x2x128xbf16, #tpu.memory_space<vmem>>, vector<1x1x2x128xbf16>
    %63 = vector.shape_cast %62 : vector<1x1x2x128xbf16> to vector<1x2x128xbf16>
    %64 = vector.shape_cast %63 : vector<1x2x128xbf16> to vector<2x128xbf16>
    %65 = arith.extf %64 : vector<2x128xbf16> to vector<2x128xf32>
    %c1_36 = arith.constant 1 : index
    %c0_37 = arith.constant 0 : index
    %c0_38 = arith.constant 0 : index
    %66 = vector.load %arg4[%c1_36, %c0_37, %c0_38] : memref<2x2x32xbf16, #tpu.memory_space<vmem>>, vector<1x2x32xbf16>
    %67 = vector.shape_cast %66 : vector<1x2x32xbf16> to vector<2x32xbf16>
    %cst_39 = arith.constant dense<0.000000e+00> : vector<2x128xf32>
    %68 = tpu.matmul %67, %6, %cst_39 {dimension_numbers = #tpu.dot_dimension_numbers<[1], [0], [0], [1], [0, 0, 1, 1], [], []>} : vector<2x32xbf16>, vector<32x128xbf16>, vector<2x128xf32> -> vector<2x128xf32>
    %69 = arith.addf %65, %68 : vector<2x128xf32>
    %70 = vector.extract_strided_slice %69 {offsets = [0, 0], sizes = [2, 32], strides = [1, 1]} : vector<2x128xf32> to vector<2x32xf32>
    %cst_40 = arith.constant 5.000000e-01 : f32
    %71 = vector.broadcast %cst_40 : f32 to vector<2x32xf32>
    %72 = arith.mulf %71, %70 : vector<2x32xf32>
    %73 = math.tanh %72 : vector<2x32xf32>
    %cst_41 = arith.constant 5.000000e-01 : f32
    %74 = vector.broadcast %cst_41 : f32 to vector<2x32xf32>
    %75 = arith.mulf %74, %73 : vector<2x32xf32>
    %cst_42 = arith.constant 5.000000e-01 : f32
    %76 = vector.broadcast %cst_42 : f32 to vector<2x32xf32>
    %77 = arith.addf %75, %76 : vector<2x32xf32>
    %78 = vector.extract_strided_slice %69 {offsets = [0, 32], sizes = [2, 32], strides = [1, 1]} : vector<2x128xf32> to vector<2x32xf32>
    %cst_43 = arith.constant 5.000000e-01 : f32
    %79 = vector.broadcast %cst_43 : f32 to vector<2x32xf32>
    %80 = arith.mulf %79, %78 : vector<2x32xf32>
    %81 = math.tanh %80 : vector<2x32xf32>
    %cst_44 = arith.constant 5.000000e-01 : f32
    %82 = vector.broadcast %cst_44 : f32 to vector<2x32xf32>
    %83 = arith.mulf %82, %81 : vector<2x32xf32>
    %cst_45 = arith.constant 5.000000e-01 : f32
    %84 = vector.broadcast %cst_45 : f32 to vector<2x32xf32>
    %85 = arith.addf %83, %84 : vector<2x32xf32>
    %86 = vector.extract_strided_slice %69 {offsets = [0, 96], sizes = [2, 32], strides = [1, 1]} : vector<2x128xf32> to vector<2x32xf32>
    %cst_46 = arith.constant 5.000000e-01 : f32
    %87 = vector.broadcast %cst_46 : f32 to vector<2x32xf32>
    %88 = arith.mulf %87, %86 : vector<2x32xf32>
    %89 = math.tanh %88 : vector<2x32xf32>
    %cst_47 = arith.constant 5.000000e-01 : f32
    %90 = vector.broadcast %cst_47 : f32 to vector<2x32xf32>
    %91 = arith.mulf %90, %89 : vector<2x32xf32>
    %cst_48 = arith.constant 5.000000e-01 : f32
    %92 = vector.broadcast %cst_48 : f32 to vector<2x32xf32>
    %93 = arith.addf %91, %92 : vector<2x32xf32>
    %94 = vector.extract_strided_slice %69 {offsets = [0, 64], sizes = [2, 32], strides = [1, 1]} : vector<2x128xf32> to vector<2x32xf32>
    %95 = math.tanh %94 : vector<2x32xf32>
    %c1_49 = arith.constant 1 : index
    %c0_50 = arith.constant 0 : index
    %c0_51 = arith.constant 0 : index
    %96 = vector.load %arg5[%c1_49, %c0_50, %c0_51] : memref<2x2x32xf32, #tpu.memory_space<vmem>>, vector<1x2x32xf32>
    %97 = vector.shape_cast %96 : vector<1x2x32xf32> to vector<2x32xf32>
    %98 = arith.mulf %85, %97 : vector<2x32xf32>
    %99 = arith.mulf %77, %95 : vector<2x32xf32>
    %100 = arith.addf %98, %99 : vector<2x32xf32>
    %101 = math.tanh %100 : vector<2x32xf32>
    %102 = arith.mulf %93, %101 : vector<2x32xf32>
    %c1_52 = arith.constant 1 : index
    %c0_53 = arith.constant 0 : index
    %c0_54 = arith.constant 0 : index
    %103 = vector.load %arg5[%c1_52, %c0_53, %c0_54] : memref<2x2x32xf32, #tpu.memory_space<vmem>>, vector<1x2x32xf32>
    %104 = vector.shape_cast %103 : vector<1x2x32xf32> to vector<2x32xf32>
    %105 = vector.shape_cast %100 : vector<2x32xf32> to vector<1x2x32xf32>
    tpu.vector_store %arg5[%c1_52, %c0_53, %c0_54], %105 {strides = array<i32>} : memref<2x2x32xf32, #tpu.memory_space<vmem>>, vector<1x2x32xf32>,
    %106 = arith.truncf %102 : vector<2x32xf32> to vector<2x32xbf16>
    %c1_55 = arith.constant 1 : index
    %c0_56 = arith.constant 0 : index
    %c0_57 = arith.constant 0 : index
    %107 = vector.load %arg4[%c1_55, %c0_56, %c0_57] : memref<2x2x32xbf16, #tpu.memory_space<vmem>>, vector<1x2x32xbf16>
    %108 = vector.shape_cast %107 : vector<1x2x32xbf16> to vector<2x32xbf16>
    %109 = vector.shape_cast %106 : vector<2x32xbf16> to vector<1x2x32xbf16>
    tpu.vector_store %arg4[%c1_55, %c0_56, %c0_57], %109 {strides = array<i32>} : memref<2x2x32xbf16, #tpu.memory_space<vmem>>, vector<1x2x32xbf16>,
    %110 = vector.shape_cast %106 : vector<2x32xbf16> to vector<1x2x32xbf16>
    %c1_58 = arith.constant 1 : index
    %111 = arith.index_cast %c0_i32_5 : i32 to index
    %c0_59 = arith.constant 0 : index
    %c0_60 = arith.constant 0 : index
    %112 = vector.load %arg3[%c1_58, %111, %c0_59, %c0_60] : memref<2x8x2x32xbf16, #tpu.memory_space<vmem>>, vector<1x1x2x32xbf16>
    %113 = vector.shape_cast %112 : vector<1x1x2x32xbf16> to vector<1x2x32xbf16>
    %114 = vector.shape_cast %110 : vector<1x2x32xbf16> to vector<1x1x2x32xbf16>
    tpu.vector_store %arg3[%c1_58, %111, %c0_59, %c0_60], %114 {strides = array<i32>} : memref<2x8x2x32xbf16, #tpu.memory_space<vmem>>, vector<1x1x2x32xbf16>,
    %c1_i32 = arith.constant 1 : i32
    %c0_61 = arith.constant 0 : index
    %115 = arith.index_cast %c1_i32 : i32 to index
    %c0_62 = arith.constant 0 : index
    %c0_63 = arith.constant 0 : index
    %116 = vector.load %arg1[%c0_61, %115, %c0_62, %c0_63] : memref<2x8x2x128xbf16, #tpu.memory_space<vmem>>, vector<1x1x2x128xbf16>
    %117 = vector.shape_cast %116 : vector<1x1x2x128xbf16> to vector<1x2x128xbf16>
    %118 = vector.shape_cast %117 : vector<1x2x128xbf16> to vector<2x128xbf16>
    %119 = arith.extf %118 : vector<2x128xbf16> to vector<2x128xf32>
    %c0_64 = arith.constant 0 : index
    %c0_65 = arith.constant 0 : index
    %c0_66 = arith.constant 0 : index
    %120 = vector.load %arg4[%c0_64, %c0_65, %c0_66] : memref<2x2x32xbf16, #tpu.memory_space<vmem>>, vector<1x2x32xbf16>
    %121 = vector.shape_cast %120 : vector<1x2x32xbf16> to vector<2x32xbf16>
    %cst_67 = arith.constant dense<0.000000e+00> : vector<2x128xf32>
    %122 = tpu.matmul %121, %4, %cst_67 {dimension_numbers = #tpu.dot_dimension_numbers<[1], [0], [0], [1], [0, 0, 1, 1], [], []>} : vector<2x32xbf16>, vector<32x128xbf16>, vector<2x128xf32> -> vector<2x128xf32>
    %123 = arith.addf %119, %122 : vector<2x128xf32>
    %124 = vector.extract_strided_slice %123 {offsets = [0, 0], sizes = [2, 32], strides = [1, 1]} : vector<2x128xf32> to vector<2x32xf32>
    %cst_68 = arith.constant 5.000000e-01 : f32
    %125 = vector.broadcast %cst_68 : f32 to vector<2x32xf32>
    %126 = arith.mulf %125, %124 : vector<2x32xf32>
    %127 = math.tanh %126 : vector<2x32xf32>
    %cst_69 = arith.constant 5.000000e-01 : f32
    %128 = vector.broadcast %cst_69 : f32 to vector<2x32xf32>
    %129 = arith.mulf %128, %127 : vector<2x32xf32>
    %cst_70 = arith.constant 5.000000e-01 : f32
    %130 = vector.broadcast %cst_70 : f32 to vector<2x32xf32>
    %131 = arith.addf %129, %130 : vector<2x32xf32>
    %132 = vector.extract_strided_slice %123 {offsets = [0, 32], sizes = [2, 32], strides = [1, 1]} : vector<2x128xf32> to vector<2x32xf32>
    %cst_71 = arith.constant 5.000000e-01 : f32
    %133 = vector.broadcast %cst_71 : f32 to vector<2x32xf32>
    %134 = arith.mulf %133, %132 : vector<2x32xf32>
    %135 = math.tanh %134 : vector<2x32xf32>
    %cst_72 = arith.constant 5.000000e-01 : f32
    %136 = vector.broadcast %cst_72 : f32 to vector<2x32xf32>
    %137 = arith.mulf %136, %135 : vector<2x32xf32>
    %cst_73 = arith.constant 5.000000e-01 : f32
    %138 = vector.broadcast %cst_73 : f32 to vector<2x32xf32>
    %139 = arith.addf %137, %138 : vector<2x32xf32>
    %140 = vector.extract_strided_slice %123 {offsets = [0, 96], sizes = [2, 32], strides = [1, 1]} : vector<2x128xf32> to vector<2x32xf32>
    %cst_74 = arith.constant 5.000000e-01 : f32
    %141 = vector.broadcast %cst_74 : f32 to vector<2x32xf32>
    %142 = arith.mulf %141, %140 : vector<2x32xf32>
    %143 = math.tanh %142 : vector<2x32xf32>
    %cst_75 = arith.constant 5.000000e-01 : f32
    %144 = vector.broadcast %cst_75 : f32 to vector<2x32xf32>
    %145 = arith.mulf %144, %143 : vector<2x32xf32>
    %cst_76 = arith.constant 5.000000e-01 : f32
    %146 = vector.broadcast %cst_76 : f32 to vector<2x32xf32>
    %147 = arith.addf %145, %146 : vector<2x32xf32>
    %148 = vector.extract_strided_slice %123 {offsets = [0, 64], sizes = [2, 32], strides = [1, 1]} : vector<2x128xf32> to vector<2x32xf32>
    %149 = math.tanh %148 : vector<2x32xf32>
    %c0_77 = arith.constant 0 : index
    %c0_78 = arith.constant 0 : index
    %c0_79 = arith.constant 0 : index
    %150 = vector.load %arg5[%c0_77, %c0_78, %c0_79] : memref<2x2x32xf32, #tpu.memory_space<vmem>>, vector<1x2x32xf32>
    %151 = vector.shape_cast %150 : vector<1x2x32xf32> to vector<2x32xf32>
    %152 = arith.mulf %139, %151 : vector<2x32xf32>
    %153 = arith.mulf %131, %149 : vector<2x32xf32>
    %154 = arith.addf %152, %153 : vector<2x32xf32>
    %155 = math.tanh %154 : vector<2x32xf32>
    %156 = arith.mulf %147, %155 : vector<2x32xf32>
    %c0_80 = arith.constant 0 : index
    %c0_81 = arith.constant 0 : index
    %c0_82 = arith.constant 0 : index
    %157 = vector.load %arg5[%c0_80, %c0_81, %c0_82] : memref<2x2x32xf32, #tpu.memory_space<vmem>>, vector<1x2x32xf32>
    %158 = vector.shape_cast %157 : vector<1x2x32xf32> to vector<2x32xf32>
    %159 = vector.shape_cast %154 : vector<2x32xf32> to vector<1x2x32xf32>
    tpu.vector_store %arg5[%c0_80, %c0_81, %c0_82], %159 {strides = array<i32>} : memref<2x2x32xf32, #tpu.memory_space<vmem>>, vector<1x2x32xf32>,
    %160 = arith.truncf %156 : vector<2x32xf32> to vector<2x32xbf16>
    %c0_83 = arith.constant 0 : index
    %c0_84 = arith.constant 0 : index
    %c0_85 = arith.constant 0 : index
    %161 = vector.load %arg4[%c0_83, %c0_84, %c0_85] : memref<2x2x32xbf16, #tpu.memory_space<vmem>>, vector<1x2x32xbf16>
    %162 = vector.shape_cast %161 : vector<1x2x32xbf16> to vector<2x32xbf16>
    %163 = vector.shape_cast %160 : vector<2x32xbf16> to vector<1x2x32xbf16>
    tpu.vector_store %arg4[%c0_83, %c0_84, %c0_85], %163 {strides = array<i32>} : memref<2x2x32xbf16, #tpu.memory_space<vmem>>, vector<1x2x32xbf16>,
    %164 = vector.shape_cast %160 : vector<2x32xbf16> to vector<1x2x32xbf16>
    %c0_86 = arith.constant 0 : index
    %165 = arith.index_cast %c1_i32 : i32 to index
    %c0_87 = arith.constant 0 : index
    %c0_88 = arith.constant 0 : index
    %166 = vector.load %arg3[%c0_86, %165, %c0_87, %c0_88] : memref<2x8x2x32xbf16, #tpu.memory_space<vmem>>, vector<1x1x2x32xbf16>
    %167 = vector.shape_cast %166 : vector<1x1x2x32xbf16> to vector<1x2x32xbf16>
    %168 = vector.shape_cast %164 : vector<1x2x32xbf16> to vector<1x1x2x32xbf16>
    tpu.vector_store %arg3[%c0_86, %165, %c0_87, %c0_88], %168 {strides = array<i32>} : memref<2x8x2x32xbf16, #tpu.memory_space<vmem>>, vector<1x1x2x32xbf16>,
    %c1_89 = arith.constant 1 : index
    %169 = arith.index_cast %c1_i32 : i32 to index
    %c0_90 = arith.constant 0 : index
    %c0_91 = arith.constant 0 : index
    %170 = vector.load %arg1[%c1_89, %169, %c0_90, %c0_91] : memref<2x8x2x128xbf16, #tpu.memory_space<vmem>>, vector<1x1x2x128xbf16>
    %171 = vector.shape_cast %170 : vector<1x1x2x128xbf16> to vector<1x2x128xbf16>
    %172 = vector.shape_cast %171 : vector<1x2x128xbf16> to vector<2x128xbf16>
    %173 = arith.extf %172 : vector<2x128xbf16> to vector<2x128xf32>
    %c1_92 = arith.constant 1 : index
    %c0_93 = arith.constant 0 : index
    %c0_94 = arith.constant 0 : index
    %174 = vector.load %arg4[%c1_92, %c0_93, %c0_94] : memref<2x2x32xbf16, #tpu.memory_space<vmem>>, vector<1x2x32xbf16>
    %175 = vector.shape_cast %174 : vector<1x2x32xbf16> to vector<2x32xbf16>
    %cst_95 = arith.constant dense<0.000000e+00> : vector<2x128xf32>
    %176 = tpu.matmul %175, %6, %cst_95 {dimension_numbers = #tpu.dot_dimension_numbers<[1], [0], [0], [1], [0, 0, 1, 1], [], []>} : vector<2x32xbf16>, vector<32x128xbf16>, vector<2x128xf32> -> vector<2x128xf32>
    %177 = arith.addf %173, %176 : vector<2x128xf32>
    %178 = vector.extract_strided_slice %177 {offsets = [0, 0], sizes = [2, 32], strides = [1, 1]} : vector<2x128xf32> to vector<2x32xf32>
    %cst_96 = arith.constant 5.000000e-01 : f32
    %179 = vector.broadcast %cst_96 : f32 to vector<2x32xf32>
    %180 = arith.mulf %179, %178 : vector<2x32xf32>
    %181 = math.tanh %180 : vector<2x32xf32>
    %cst_97 = arith.constant 5.000000e-01 : f32
    %182 = vector.broadcast %cst_97 : f32 to vector<2x32xf32>
    %183 = arith.mulf %182, %181 : vector<2x32xf32>
    %cst_98 = arith.constant 5.000000e-01 : f32
    %184 = vector.broadcast %cst_98 : f32 to vector<2x32xf32>
    %185 = arith.addf %183, %184 : vector<2x32xf32>
    %186 = vector.extract_strided_slice %177 {offsets = [0, 32], sizes = [2, 32], strides = [1, 1]} : vector<2x128xf32> to vector<2x32xf32>
    %cst_99 = arith.constant 5.000000e-01 : f32
    %187 = vector.broadcast %cst_99 : f32 to vector<2x32xf32>
    %188 = arith.mulf %187, %186 : vector<2x32xf32>
    %189 = math.tanh %188 : vector<2x32xf32>
    %cst_100 = arith.constant 5.000000e-01 : f32
    %190 = vector.broadcast %cst_100 : f32 to vector<2x32xf32>
    %191 = arith.mulf %190, %189 : vector<2x32xf32>
    %cst_101 = arith.constant 5.000000e-01 : f32
    %192 = vector.broadcast %cst_101 : f32 to vector<2x32xf32>
    %193 = arith.addf %191, %192 : vector<2x32xf32>
    %194 = vector.extract_strided_slice %177 {offsets = [0, 96], sizes = [2, 32], strides = [1, 1]} : vector<2x128xf32> to vector<2x32xf32>
    %cst_102 = arith.constant 5.000000e-01 : f32
    %195 = vector.broadcast %cst_102 : f32 to vector<2x32xf32>
    %196 = arith.mulf %195, %194 : vector<2x32xf32>
    %197 = math.tanh %196 : vector<2x32xf32>
    %cst_103 = arith.constant 5.000000e-01 : f32
    %198 = vector.broadcast %cst_103 : f32 to vector<2x32xf32>
    %199 = arith.mulf %198, %197 : vector<2x32xf32>
    %cst_104 = arith.constant 5.000000e-01 : f32
    %200 = vector.broadcast %cst_104 : f32 to vector<2x32xf32>
    %201 = arith.addf %199, %200 : vector<2x32xf32>
    %202 = vector.extract_strided_slice %177 {offsets = [0, 64], sizes = [2, 32], strides = [1, 1]} : vector<2x128xf32> to vector<2x32xf32>
    %203 = math.tanh %202 : vector<2x32xf32>
    %c1_105 = arith.constant 1 : index
    %c0_106 = arith.constant 0 : index
    %c0_107 = arith.constant 0 : index
    %204 = vector.load %arg5[%c1_105, %c0_106, %c0_107] : memref<2x2x32xf32, #tpu.memory_space<vmem>>, vector<1x2x32xf32>
    %205 = vector.shape_cast %204 : vector<1x2x32xf32> to vector<2x32xf32>
    %206 = arith.mulf %193, %205 : vector<2x32xf32>
    %207 = arith.mulf %185, %203 : vector<2x32xf32>
    %208 = arith.addf %206, %207 : vector<2x32xf32>
    %209 = math.tanh %208 : vector<2x32xf32>
    %210 = arith.mulf %201, %209 : vector<2x32xf32>
    %c1_108 = arith.constant 1 : index
    %c0_109 = arith.constant 0 : index
    %c0_110 = arith.constant 0 : index
    %211 = vector.load %arg5[%c1_108, %c0_109, %c0_110] : memref<2x2x32xf32, #tpu.memory_space<vmem>>, vector<1x2x32xf32>
    %212 = vector.shape_cast %211 : vector<1x2x32xf32> to vector<2x32xf32>
    %213 = vector.shape_cast %208 : vector<2x32xf32> to vector<1x2x32xf32>
    tpu.vector_store %arg5[%c1_108, %c0_109, %c0_110], %213 {strides = array<i32>} : memref<2x2x32xf32, #tpu.memory_space<vmem>>, vector<1x2x32xf32>,
    %214 = arith.truncf %210 : vector<2x32xf32> to vector<2x32xbf16>
    %c1_111 = arith.constant 1 : index
    %c0_112 = arith.constant 0 : index
    %c0_113 = arith.constant 0 : index
    %215 = vector.load %arg4[%c1_111, %c0_112, %c0_113] : memref<2x2x32xbf16, #tpu.memory_space<vmem>>, vector<1x2x32xbf16>
    %216 = vector.shape_cast %215 : vector<1x2x32xbf16> to vector<2x32xbf16>
    %217 = vector.shape_cast %214 : vector<2x32xbf16> to vector<1x2x32xbf16>
    tpu.vector_store %arg4[%c1_111, %c0_112, %c0_113], %217 {strides = array<i32>} : memref<2x2x32xbf16, #tpu.memory_space<vmem>>, vector<1x2x32xbf16>,
    %218 = vector.shape_cast %214 : vector<2x32xbf16> to vector<1x2x32xbf16>
    %c1_114 = arith.constant 1 : index
    %219 = arith.index_cast %c1_i32 : i32 to index
    %c0_115 = arith.constant 0 : index
    %c0_116 = arith.constant 0 : index
    %220 = vector.load %arg3[%c1_114, %219, %c0_115, %c0_116] : memref<2x8x2x32xbf16, #tpu.memory_space<vmem>>, vector<1x1x2x32xbf16>
    %221 = vector.shape_cast %220 : vector<1x1x2x32xbf16> to vector<1x2x32xbf16>
    %222 = vector.shape_cast %218 : vector<1x2x32xbf16> to vector<1x1x2x32xbf16>
    tpu.vector_store %arg3[%c1_114, %219, %c0_115, %c0_116], %222 {strides = array<i32>} : memref<2x8x2x32xbf16, #tpu.memory_space<vmem>>, vector<1x1x2x32xbf16>,
    %c2_i32 = arith.constant 2 : i32
    %c0_117 = arith.constant 0 : index
    %223 = arith.index_cast %c2_i32 : i32 to index
    %c0_118 = arith.constant 0 : index
    %c0_119 = arith.constant 0 : index
    %224 = vector.load %arg1[%c0_117, %223, %c0_118, %c0_119] : memref<2x8x2x128xbf16, #tpu.memory_space<vmem>>, vector<1x1x2x128xbf16>
    %225 = vector.shape_cast %224 : vector<1x1x2x128xbf16> to vector<1x2x128xbf16>
    %226 = vector.shape_cast %225 : vector<1x2x128xbf16> to vector<2x128xbf16>
    %227 = arith.extf %226 : vector<2x128xbf16> to vector<2x128xf32>
    %c0_120 = arith.constant 0 : index
    %c0_121 = arith.constant 0 : index
    %c0_122 = arith.constant 0 : index
    %228 = vector.load %arg4[%c0_120, %c0_121, %c0_122] : memref<2x2x32xbf16, #tpu.memory_space<vmem>>, vector<1x2x32xbf16>
    %229 = vector.shape_cast %228 : vector<1x2x32xbf16> to vector<2x32xbf16>
    %cst_123 = arith.constant dense<0.000000e+00> : vector<2x128xf32>
    %230 = tpu.matmul %229, %4, %cst_123 {dimension_numbers = #tpu.dot_dimension_numbers<[1], [0], [0], [1], [0, 0, 1, 1], [], []>} : vector<2x32xbf16>, vector<32x128xbf16>, vector<2x128xf32> -> vector<2x128xf32>
    %231 = arith.addf %227, %230 : vector<2x128xf32>
    %232 = vector.extract_strided_slice %231 {offsets = [0, 0], sizes = [2, 32], strides = [1, 1]} : vector<2x128xf32> to vector<2x32xf32>
    %cst_124 = arith.constant 5.000000e-01 : f32
    %233 = vector.broadcast %cst_124 : f32 to vector<2x32xf32>
    %234 = arith.mulf %233, %232 : vector<2x32xf32>
    %235 = math.tanh %234 : vector<2x32xf32>
    %cst_125 = arith.constant 5.000000e-01 : f32
    %236 = vector.broadcast %cst_125 : f32 to vector<2x32xf32>
    %237 = arith.mulf %236, %235 : vector<2x32xf32>
    %cst_126 = arith.constant 5.000000e-01 : f32
    %238 = vector.broadcast %cst_126 : f32 to vector<2x32xf32>
    %239 = arith.addf %237, %238 : vector<2x32xf32>
    %240 = vector.extract_strided_slice %231 {offsets = [0, 32], sizes = [2, 32], strides = [1, 1]} : vector<2x128xf32> to vector<2x32xf32>
    %cst_127 = arith.constant 5.000000e-01 : f32
    %241 = vector.broadcast %cst_127 : f32 to vector<2x32xf32>
    %242 = arith.mulf %241, %240 : vector<2x32xf32>
    %243 = math.tanh %242 : vector<2x32xf32>
    %cst_128 = arith.constant 5.000000e-01 : f32
    %244 = vector.broadcast %cst_128 : f32 to vector<2x32xf32>
    %245 = arith.mulf %244, %243 : vector<2x32xf32>
    %cst_129 = arith.constant 5.000000e-01 : f32
    %246 = vector.broadcast %cst_129 : f32 to vector<2x32xf32>
    %247 = arith.addf %245, %246 : vector<2x32xf32>
    %248 = vector.extract_strided_slice %231 {offsets = [0, 96], sizes = [2, 32], strides = [1, 1]} : vector<2x128xf32> to vector<2x32xf32>
    %cst_130 = arith.constant 5.000000e-01 : f32
    %249 = vector.broadcast %cst_130 : f32 to vector<2x32xf32>
    %250 = arith.mulf %249, %248 : vector<2x32xf32>
    %251 = math.tanh %250 : vector<2x32xf32>
    %cst_131 = arith.constant 5.000000e-01 : f32
    %252 = vector.broadcast %cst_131 : f32 to vector<2x32xf32>
    %253 = arith.mulf %252, %251 : vector<2x32xf32>
    %cst_132 = arith.constant 5.000000e-01 : f32
    %254 = vector.broadcast %cst_132 : f32 to vector<2x32xf32>
    %255 = arith.addf %253, %254 : vector<2x32xf32>
    %256 = vector.extract_strided_slice %231 {offsets = [0, 64], sizes = [2, 32], strides = [1, 1]} : vector<2x128xf32> to vector<2x32xf32>
    %257 = math.tanh %256 : vector<2x32xf32>
    %c0_133 = arith.constant 0 : index
    %c0_134 = arith.constant 0 : index
    %c0_135 = arith.constant 0 : index
    %258 = vector.load %arg5[%c0_133, %c0_134, %c0_135] : memref<2x2x32xf32, #tpu.memory_space<vmem>>, vector<1x2x32xf32>
    %259 = vector.shape_cast %258 : vector<1x2x32xf32> to vector<2x32xf32>
    %260 = arith.mulf %247, %259 : vector<2x32xf32>
    %261 = arith.mulf %239, %257 : vector<2x32xf32>
    %262 = arith.addf %260, %261 : vector<2x32xf32>
    %263 = math.tanh %262 : vector<2x32xf32>
    %264 = arith.mulf %255, %263 : vector<2x32xf32>
    %c0_136 = arith.constant 0 : index
    %c0_137 = arith.constant 0 : index
    %c0_138 = arith.constant 0 : index
    %265 = vector.load %arg5[%c0_136, %c0_137, %c0_138] : memref<2x2x32xf32, #tpu.memory_space<vmem>>, vector<1x2x32xf32>
    %266 = vector.shape_cast %265 : vector<1x2x32xf32> to vector<2x32xf32>
    %267 = vector.shape_cast %262 : vector<2x32xf32> to vector<1x2x32xf32>
    tpu.vector_store %arg5[%c0_136, %c0_137, %c0_138], %267 {strides = array<i32>} : memref<2x2x32xf32, #tpu.memory_space<vmem>>, vector<1x2x32xf32>,
    %268 = arith.truncf %264 : vector<2x32xf32> to vector<2x32xbf16>
    %c0_139 = arith.constant 0 : index
    %c0_140 = arith.constant 0 : index
    %c0_141 = arith.constant 0 : index
    %269 = vector.load %arg4[%c0_139, %c0_140, %c0_141] : memref<2x2x32xbf16, #tpu.memory_space<vmem>>, vector<1x2x32xbf16>
    %270 = vector.shape_cast %269 : vector<1x2x32xbf16> to vector<2x32xbf16>
    %271 = vector.shape_cast %268 : vector<2x32xbf16> to vector<1x2x32xbf16>
    tpu.vector_store %arg4[%c0_139, %c0_140, %c0_141], %271 {strides = array<i32>} : memref<2x2x32xbf16, #tpu.memory_space<vmem>>, vector<1x2x32xbf16>,
    %272 = vector.shape_cast %268 : vector<2x32xbf16> to vector<1x2x32xbf16>
    %c0_142 = arith.constant 0 : index
    %273 = arith.index_cast %c2_i32 : i32 to index
    %c0_143 = arith.constant 0 : index
    %c0_144 = arith.constant 0 : index
    %274 = vector.load %arg3[%c0_142, %273, %c0_143, %c0_144] : memref<2x8x2x32xbf16, #tpu.memory_space<vmem>>, vector<1x1x2x32xbf16>
    %275 = vector.shape_cast %274 : vector<1x1x2x32xbf16> to vector<1x2x32xbf16>
    %276 = vector.shape_cast %272 : vector<1x2x32xbf16> to vector<1x1x2x32xbf16>
    tpu.vector_store %arg3[%c0_142, %273, %c0_143, %c0_144], %276 {strides = array<i32>} : memref<2x8x2x32xbf16, #tpu.memory_space<vmem>>, vector<1x1x2x32xbf16>,
    %c1_145 = arith.constant 1 : index
    %277 = arith.index_cast %c2_i32 : i32 to index
    %c0_146 = arith.constant 0 : index
    %c0_147 = arith.constant 0 : index
    %278 = vector.load %arg1[%c1_145, %277, %c0_146, %c0_147] : memref<2x8x2x128xbf16, #tpu.memory_space<vmem>>, vector<1x1x2x128xbf16>
    %279 = vector.shape_cast %278 : vector<1x1x2x128xbf16> to vector<1x2x128xbf16>
    %280 = vector.shape_cast %279 : vector<1x2x128xbf16> to vector<2x128xbf16>
    %281 = arith.extf %280 : vector<2x128xbf16> to vector<2x128xf32>
    %c1_148 = arith.constant 1 : index
    %c0_149 = arith.constant 0 : index
    %c0_150 = arith.constant 0 : index
    %282 = vector.load %arg4[%c1_148, %c0_149, %c0_150] : memref<2x2x32xbf16, #tpu.memory_space<vmem>>, vector<1x2x32xbf16>
    %283 = vector.shape_cast %282 : vector<1x2x32xbf16> to vector<2x32xbf16>
    %cst_151 = arith.constant dense<0.000000e+00> : vector<2x128xf32>
    %284 = tpu.matmul %283, %6, %cst_151 {dimension_numbers = #tpu.dot_dimension_numbers<[1], [0], [0], [1], [0, 0, 1, 1], [], []>} : vector<2x32xbf16>, vector<32x128xbf16>, vector<2x128xf32> -> vector<2x128xf32>
    %285 = arith.addf %281, %284 : vector<2x128xf32>
    %286 = vector.extract_strided_slice %285 {offsets = [0, 0], sizes = [2, 32], strides = [1, 1]} : vector<2x128xf32> to vector<2x32xf32>
    %cst_152 = arith.constant 5.000000e-01 : f32
    %287 = vector.broadcast %cst_152 : f32 to vector<2x32xf32>
    %288 = arith.mulf %287, %286 : vector<2x32xf32>
    %289 = math.tanh %288 : vector<2x32xf32>
    %cst_153 = arith.constant 5.000000e-01 : f32
    %290 = vector.broadcast %cst_153 : f32 to vector<2x32xf32>
    %291 = arith.mulf %290, %289 : vector<2x32xf32>
    %cst_154 = arith.constant 5.000000e-01 : f32
    %292 = vector.broadcast %cst_154 : f32 to vector<2x32xf32>
    %293 = arith.addf %291, %292 : vector<2x32xf32>
    %294 = vector.extract_strided_slice %285 {offsets = [0, 32], sizes = [2, 32], strides = [1, 1]} : vector<2x128xf32> to vector<2x32xf32>
    %cst_155 = arith.constant 5.000000e-01 : f32
    %295 = vector.broadcast %cst_155 : f32 to vector<2x32xf32>
    %296 = arith.mulf %295, %294 : vector<2x32xf32>
    %297 = math.tanh %296 : vector<2x32xf32>
    %cst_156 = arith.constant 5.000000e-01 : f32
    %298 = vector.broadcast %cst_156 : f32 to vector<2x32xf32>
    %299 = arith.mulf %298, %297 : vector<2x32xf32>
    %cst_157 = arith.constant 5.000000e-01 : f32
    %300 = vector.broadcast %cst_157 : f32 to vector<2x32xf32>
    %301 = arith.addf %299, %300 : vector<2x32xf32>
    %302 = vector.extract_strided_slice %285 {offsets = [0, 96], sizes = [2, 32], strides = [1, 1]} : vector<2x128xf32> to vector<2x32xf32>
    %cst_158 = arith.constant 5.000000e-01 : f32
    %303 = vector.broadcast %cst_158 : f32 to vector<2x32xf32>
    %304 = arith.mulf %303, %302 : vector<2x32xf32>
    %305 = math.tanh %304 : vector<2x32xf32>
    %cst_159 = arith.constant 5.000000e-01 : f32
    %306 = vector.broadcast %cst_159 : f32 to vector<2x32xf32>
    %307 = arith.mulf %306, %305 : vector<2x32xf32>
    %cst_160 = arith.constant 5.000000e-01 : f32
    %308 = vector.broadcast %cst_160 : f32 to vector<2x32xf32>
    %309 = arith.addf %307, %308 : vector<2x32xf32>
    %310 = vector.extract_strided_slice %285 {offsets = [0, 64], sizes = [2, 32], strides = [1, 1]} : vector<2x128xf32> to vector<2x32xf32>
    %311 = math.tanh %310 : vector<2x32xf32>
    %c1_161 = arith.constant 1 : index
    %c0_162 = arith.constant 0 : index
    %c0_163 = arith.constant 0 : index
    %312 = vector.load %arg5[%c1_161, %c0_162, %c0_163] : memref<2x2x32xf32, #tpu.memory_space<vmem>>, vector<1x2x32xf32>
    %313 = vector.shape_cast %312 : vector<1x2x32xf32> to vector<2x32xf32>
    %314 = arith.mulf %301, %313 : vector<2x32xf32>
    %315 = arith.mulf %293, %311 : vector<2x32xf32>
    %316 = arith.addf %314, %315 : vector<2x32xf32>
    %317 = math.tanh %316 : vector<2x32xf32>
    %318 = arith.mulf %309, %317 : vector<2x32xf32>
    %c1_164 = arith.constant 1 : index
    %c0_165 = arith.constant 0 : index
    %c0_166 = arith.constant 0 : index
    %319 = vector.load %arg5[%c1_164, %c0_165, %c0_166] : memref<2x2x32xf32, #tpu.memory_space<vmem>>, vector<1x2x32xf32>
    %320 = vector.shape_cast %319 : vector<1x2x32xf32> to vector<2x32xf32>
    %321 = vector.shape_cast %316 : vector<2x32xf32> to vector<1x2x32xf32>
    tpu.vector_store %arg5[%c1_164, %c0_165, %c0_166], %321 {strides = array<i32>} : memref<2x2x32xf32, #tpu.memory_space<vmem>>, vector<1x2x32xf32>,
    %322 = arith.truncf %318 : vector<2x32xf32> to vector<2x32xbf16>
    %c1_167 = arith.constant 1 : index
    %c0_168 = arith.constant 0 : index
    %c0_169 = arith.constant 0 : index
    %323 = vector.load %arg4[%c1_167, %c0_168, %c0_169] : memref<2x2x32xbf16, #tpu.memory_space<vmem>>, vector<1x2x32xbf16>
    %324 = vector.shape_cast %323 : vector<1x2x32xbf16> to vector<2x32xbf16>
    %325 = vector.shape_cast %322 : vector<2x32xbf16> to vector<1x2x32xbf16>
    tpu.vector_store %arg4[%c1_167, %c0_168, %c0_169], %325 {strides = array<i32>} : memref<2x2x32xbf16, #tpu.memory_space<vmem>>, vector<1x2x32xbf16>,
    %326 = vector.shape_cast %322 : vector<2x32xbf16> to vector<1x2x32xbf16>
    %c1_170 = arith.constant 1 : index
    %327 = arith.index_cast %c2_i32 : i32 to index
    %c0_171 = arith.constant 0 : index
    %c0_172 = arith.constant 0 : index
    %328 = vector.load %arg3[%c1_170, %327, %c0_171, %c0_172] : memref<2x8x2x32xbf16, #tpu.memory_space<vmem>>, vector<1x1x2x32xbf16>
    %329 = vector.shape_cast %328 : vector<1x1x2x32xbf16> to vector<1x2x32xbf16>
    %330 = vector.shape_cast %326 : vector<1x2x32xbf16> to vector<1x1x2x32xbf16>
    tpu.vector_store %arg3[%c1_170, %327, %c0_171, %c0_172], %330 {strides = array<i32>} : memref<2x8x2x32xbf16, #tpu.memory_space<vmem>>, vector<1x1x2x32xbf16>,
    %c3_i32 = arith.constant 3 : i32
    %c0_173 = arith.constant 0 : index
    %331 = arith.index_cast %c3_i32 : i32 to index
    %c0_174 = arith.constant 0 : index
    %c0_175 = arith.constant 0 : index
    %332 = vector.load %arg1[%c0_173, %331, %c0_174, %c0_175] : memref<2x8x2x128xbf16, #tpu.memory_space<vmem>>, vector<1x1x2x128xbf16>
    %333 = vector.shape_cast %332 : vector<1x1x2x128xbf16> to vector<1x2x128xbf16>
    %334 = vector.shape_cast %333 : vector<1x2x128xbf16> to vector<2x128xbf16>
    %335 = arith.extf %334 : vector<2x128xbf16> to vector<2x128xf32>
    %c0_176 = arith.constant 0 : index
    %c0_177 = arith.constant 0 : index
    %c0_178 = arith.constant 0 : index
    %336 = vector.load %arg4[%c0_176, %c0_177, %c0_178] : memref<2x2x32xbf16, #tpu.memory_space<vmem>>, vector<1x2x32xbf16>
    %337 = vector.shape_cast %336 : vector<1x2x32xbf16> to vector<2x32xbf16>
    %cst_179 = arith.constant dense<0.000000e+00> : vector<2x128xf32>
    %338 = tpu.matmul %337, %4, %cst_179 {dimension_numbers = #tpu.dot_dimension_numbers<[1], [0], [0], [1], [0, 0, 1, 1], [], []>} : vector<2x32xbf16>, vector<32x128xbf16>, vector<2x128xf32> -> vector<2x128xf32>
    %339 = arith.addf %335, %338 : vector<2x128xf32>
    %340 = vector.extract_strided_slice %339 {offsets = [0, 0], sizes = [2, 32], strides = [1, 1]} : vector<2x128xf32> to vector<2x32xf32>
    %cst_180 = arith.constant 5.000000e-01 : f32
    %341 = vector.broadcast %cst_180 : f32 to vector<2x32xf32>
    %342 = arith.mulf %341, %340 : vector<2x32xf32>
    %343 = math.tanh %342 : vector<2x32xf32>
    %cst_181 = arith.constant 5.000000e-01 : f32
    %344 = vector.broadcast %cst_181 : f32 to vector<2x32xf32>
    %345 = arith.mulf %344, %343 : vector<2x32xf32>
    %cst_182 = arith.constant 5.000000e-01 : f32
    %346 = vector.broadcast %cst_182 : f32 to vector<2x32xf32>
    %347 = arith.addf %345, %346 : vector<2x32xf32>
    %348 = vector.extract_strided_slice %339 {offsets = [0, 32], sizes = [2, 32], strides = [1, 1]} : vector<2x128xf32> to vector<2x32xf32>
    %cst_183 = arith.constant 5.000000e-01 : f32
    %349 = vector.broadcast %cst_183 : f32 to vector<2x32xf32>
    %350 = arith.mulf %349, %348 : vector<2x32xf32>
    %351 = math.tanh %350 : vector<2x32xf32>
    %cst_184 = arith.constant 5.000000e-01 : f32
    %352 = vector.broadcast %cst_184 : f32 to vector<2x32xf32>
    %353 = arith.mulf %352, %351 : vector<2x32xf32>
    %cst_185 = arith.constant 5.000000e-01 : f32
    %354 = vector.broadcast %cst_185 : f32 to vector<2x32xf32>
    %355 = arith.addf %353, %354 : vector<2x32xf32>
    %356 = vector.extract_strided_slice %339 {offsets = [0, 96], sizes = [2, 32], strides = [1, 1]} : vector<2x128xf32> to vector<2x32xf32>
    %cst_186 = arith.constant 5.000000e-01 : f32
    %357 = vector.broadcast %cst_186 : f32 to vector<2x32xf32>
    %358 = arith.mulf %357, %356 : vector<2x32xf32>
    %359 = math.tanh %358 : vector<2x32xf32>
    %cst_187 = arith.constant 5.000000e-01 : f32
    %360 = vector.broadcast %cst_187 : f32 to vector<2x32xf32>
    %361 = arith.mulf %360, %359 : vector<2x32xf32>
    %cst_188 = arith.constant 5.000000e-01 : f32
    %362 = vector.broadcast %cst_188 : f32 to vector<2x32xf32>
    %363 = arith.addf %361, %362 : vector<2x32xf32>
    %364 = vector.extract_strided_slice %339 {offsets = [0, 64], sizes = [2, 32], strides = [1, 1]} : vector<2x128xf32> to vector<2x32xf32>
    %365 = math.tanh %364 : vector<2x32xf32>
    %c0_189 = arith.constant 0 : index
    %c0_190 = arith.constant 0 : index
    %c0_191 = arith.constant 0 : index
    %366 = vector.load %arg5[%c0_189, %c0_190, %c0_191] : memref<2x2x32xf32, #tpu.memory_space<vmem>>, vector<1x2x32xf32>
    %367 = vector.shape_cast %366 : vector<1x2x32xf32> to vector<2x32xf32>
    %368 = arith.mulf %355, %367 : vector<2x32xf32>
    %369 = arith.mulf %347, %365 : vector<2x32xf32>
    %370 = arith.addf %368, %369 : vector<2x32xf32>
    %371 = math.tanh %370 : vector<2x32xf32>
    %372 = arith.mulf %363, %371 : vector<2x32xf32>
    %c0_192 = arith.constant 0 : index
    %c0_193 = arith.constant 0 : index
    %c0_194 = arith.constant 0 : index
    %373 = vector.load %arg5[%c0_192, %c0_193, %c0_194] : memref<2x2x32xf32, #tpu.memory_space<vmem>>, vector<1x2x32xf32>
    %374 = vector.shape_cast %373 : vector<1x2x32xf32> to vector<2x32xf32>
    %375 = vector.shape_cast %370 : vector<2x32xf32> to vector<1x2x32xf32>
    tpu.vector_store %arg5[%c0_192, %c0_193, %c0_194], %375 {strides = array<i32>} : memref<2x2x32xf32, #tpu.memory_space<vmem>>, vector<1x2x32xf32>,
    %376 = arith.truncf %372 : vector<2x32xf32> to vector<2x32xbf16>
    %c0_195 = arith.constant 0 : index
    %c0_196 = arith.constant 0 : index
    %c0_197 = arith.constant 0 : index
    %377 = vector.load %arg4[%c0_195, %c0_196, %c0_197] : memref<2x2x32xbf16, #tpu.memory_space<vmem>>, vector<1x2x32xbf16>
    %378 = vector.shape_cast %377 : vector<1x2x32xbf16> to vector<2x32xbf16>
    %379 = vector.shape_cast %376 : vector<2x32xbf16> to vector<1x2x32xbf16>
    tpu.vector_store %arg4[%c0_195, %c0_196, %c0_197], %379 {strides = array<i32>} : memref<2x2x32xbf16, #tpu.memory_space<vmem>>, vector<1x2x32xbf16>,
    %380 = vector.shape_cast %376 : vector<2x32xbf16> to vector<1x2x32xbf16>
    %c0_198 = arith.constant 0 : index
    %381 = arith.index_cast %c3_i32 : i32 to index
    %c0_199 = arith.constant 0 : index
    %c0_200 = arith.constant 0 : index
    %382 = vector.load %arg3[%c0_198, %381, %c0_199, %c0_200] : memref<2x8x2x32xbf16, #tpu.memory_space<vmem>>, vector<1x1x2x32xbf16>
    %383 = vector.shape_cast %382 : vector<1x1x2x32xbf16> to vector<1x2x32xbf16>
    %384 = vector.shape_cast %380 : vector<1x2x32xbf16> to vector<1x1x2x32xbf16>
    tpu.vector_store %arg3[%c0_198, %381, %c0_199, %c0_200], %384 {strides = array<i32>} : memref<2x8x2x32xbf16, #tpu.memory_space<vmem>>, vector<1x1x2x32xbf16>,
    %c1_201 = arith.constant 1 : index
    %385 = arith.index_cast %c3_i32 : i32 to index
    %c0_202 = arith.constant 0 : index
    %c0_203 = arith.constant 0 : index
    %386 = vector.load %arg1[%c1_201, %385, %c0_202, %c0_203] : memref<2x8x2x128xbf16, #tpu.memory_space<vmem>>, vector<1x1x2x128xbf16>
    %387 = vector.shape_cast %386 : vector<1x1x2x128xbf16> to vector<1x2x128xbf16>
    %388 = vector.shape_cast %387 : vector<1x2x128xbf16> to vector<2x128xbf16>
    %389 = arith.extf %388 : vector<2x128xbf16> to vector<2x128xf32>
    %c1_204 = arith.constant 1 : index
    %c0_205 = arith.constant 0 : index
    %c0_206 = arith.constant 0 : index
    %390 = vector.load %arg4[%c1_204, %c0_205, %c0_206] : memref<2x2x32xbf16, #tpu.memory_space<vmem>>, vector<1x2x32xbf16>
    %391 = vector.shape_cast %390 : vector<1x2x32xbf16> to vector<2x32xbf16>
    %cst_207 = arith.constant dense<0.000000e+00> : vector<2x128xf32>
    %392 = tpu.matmul %391, %6, %cst_207 {dimension_numbers = #tpu.dot_dimension_numbers<[1], [0], [0], [1], [0, 0, 1, 1], [], []>} : vector<2x32xbf16>, vector<32x128xbf16>, vector<2x128xf32> -> vector<2x128xf32>
    %393 = arith.addf %389, %392 : vector<2x128xf32>
    %394 = vector.extract_strided_slice %393 {offsets = [0, 0], sizes = [2, 32], strides = [1, 1]} : vector<2x128xf32> to vector<2x32xf32>
    %cst_208 = arith.constant 5.000000e-01 : f32
    %395 = vector.broadcast %cst_208 : f32 to vector<2x32xf32>
    %396 = arith.mulf %395, %394 : vector<2x32xf32>
    %397 = math.tanh %396 : vector<2x32xf32>
    %cst_209 = arith.constant 5.000000e-01 : f32
    %398 = vector.broadcast %cst_209 : f32 to vector<2x32xf32>
    %399 = arith.mulf %398, %397 : vector<2x32xf32>
    %cst_210 = arith.constant 5.000000e-01 : f32
    %400 = vector.broadcast %cst_210 : f32 to vector<2x32xf32>
    %401 = arith.addf %399, %400 : vector<2x32xf32>
    %402 = vector.extract_strided_slice %393 {offsets = [0, 32], sizes = [2, 32], strides = [1, 1]} : vector<2x128xf32> to vector<2x32xf32>
    %cst_211 = arith.constant 5.000000e-01 : f32
    %403 = vector.broadcast %cst_211 : f32 to vector<2x32xf32>
    %404 = arith.mulf %403, %402 : vector<2x32xf32>
    %405 = math.tanh %404 : vector<2x32xf32>
    %cst_212 = arith.constant 5.000000e-01 : f32
    %406 = vector.broadcast %cst_212 : f32 to vector<2x32xf32>
    %407 = arith.mulf %406, %405 : vector<2x32xf32>
    %cst_213 = arith.constant 5.000000e-01 : f32
    %408 = vector.broadcast %cst_213 : f32 to vector<2x32xf32>
    %409 = arith.addf %407, %408 : vector<2x32xf32>
    %410 = vector.extract_strided_slice %393 {offsets = [0, 96], sizes = [2, 32], strides = [1, 1]} : vector<2x128xf32> to vector<2x32xf32>
    %cst_214 = arith.constant 5.000000e-01 : f32
    %411 = vector.broadcast %cst_214 : f32 to vector<2x32xf32>
    %412 = arith.mulf %411, %410 : vector<2x32xf32>
    %413 = math.tanh %412 : vector<2x32xf32>
    %cst_215 = arith.constant 5.000000e-01 : f32
    %414 = vector.broadcast %cst_215 : f32 to vector<2x32xf32>
    %415 = arith.mulf %414, %413 : vector<2x32xf32>
    %cst_216 = arith.constant 5.000000e-01 : f32
    %416 = vector.broadcast %cst_216 : f32 to vector<2x32xf32>
    %417 = arith.addf %415, %416 : vector<2x32xf32>
    %418 = vector.extract_strided_slice %393 {offsets = [0, 64], sizes = [2, 32], strides = [1, 1]} : vector<2x128xf32> to vector<2x32xf32>
    %419 = math.tanh %418 : vector<2x32xf32>
    %c1_217 = arith.constant 1 : index
    %c0_218 = arith.constant 0 : index
    %c0_219 = arith.constant 0 : index
    %420 = vector.load %arg5[%c1_217, %c0_218, %c0_219] : memref<2x2x32xf32, #tpu.memory_space<vmem>>, vector<1x2x32xf32>
    %421 = vector.shape_cast %420 : vector<1x2x32xf32> to vector<2x32xf32>
    %422 = arith.mulf %409, %421 : vector<2x32xf32>
    %423 = arith.mulf %401, %419 : vector<2x32xf32>
    %424 = arith.addf %422, %423 : vector<2x32xf32>
    %425 = math.tanh %424 : vector<2x32xf32>
    %426 = arith.mulf %417, %425 : vector<2x32xf32>
    %c1_220 = arith.constant 1 : index
    %c0_221 = arith.constant 0 : index
    %c0_222 = arith.constant 0 : index
    %427 = vector.load %arg5[%c1_220, %c0_221, %c0_222] : memref<2x2x32xf32, #tpu.memory_space<vmem>>, vector<1x2x32xf32>
    %428 = vector.shape_cast %427 : vector<1x2x32xf32> to vector<2x32xf32>
    %429 = vector.shape_cast %424 : vector<2x32xf32> to vector<1x2x32xf32>
    tpu.vector_store %arg5[%c1_220, %c0_221, %c0_222], %429 {strides = array<i32>} : memref<2x2x32xf32, #tpu.memory_space<vmem>>, vector<1x2x32xf32>,
    %430 = arith.truncf %426 : vector<2x32xf32> to vector<2x32xbf16>
    %c1_223 = arith.constant 1 : index
    %c0_224 = arith.constant 0 : index
    %c0_225 = arith.constant 0 : index
    %431 = vector.load %arg4[%c1_223, %c0_224, %c0_225] : memref<2x2x32xbf16, #tpu.memory_space<vmem>>, vector<1x2x32xbf16>
    %432 = vector.shape_cast %431 : vector<1x2x32xbf16> to vector<2x32xbf16>
    %433 = vector.shape_cast %430 : vector<2x32xbf16> to vector<1x2x32xbf16>
    tpu.vector_store %arg4[%c1_223, %c0_224, %c0_225], %433 {strides = array<i32>} : memref<2x2x32xbf16, #tpu.memory_space<vmem>>, vector<1x2x32xbf16>,
    %434 = vector.shape_cast %430 : vector<2x32xbf16> to vector<1x2x32xbf16>
    %c1_226 = arith.constant 1 : index
    %435 = arith.index_cast %c3_i32 : i32 to index
    %c0_227 = arith.constant 0 : index
    %c0_228 = arith.constant 0 : index
    %436 = vector.load %arg3[%c1_226, %435, %c0_227, %c0_228] : memref<2x8x2x32xbf16, #tpu.memory_space<vmem>>, vector<1x1x2x32xbf16>
    %437 = vector.shape_cast %436 : vector<1x1x2x32xbf16> to vector<1x2x32xbf16>
    %438 = vector.shape_cast %434 : vector<1x2x32xbf16> to vector<1x1x2x32xbf16>
    tpu.vector_store %arg3[%c1_226, %435, %c0_227, %c0_228], %438 {strides = array<i32>} : memref<2x8x2x32xbf16, #tpu.memory_space<vmem>>, vector<1x1x2x32xbf16>,
    %c4_i32 = arith.constant 4 : i32
    %c0_229 = arith.constant 0 : index
    %439 = arith.index_cast %c4_i32 : i32 to index
    %c0_230 = arith.constant 0 : index
    %c0_231 = arith.constant 0 : index
    %440 = vector.load %arg1[%c0_229, %439, %c0_230, %c0_231] : memref<2x8x2x128xbf16, #tpu.memory_space<vmem>>, vector<1x1x2x128xbf16>
    %441 = vector.shape_cast %440 : vector<1x1x2x128xbf16> to vector<1x2x128xbf16>
    %442 = vector.shape_cast %441 : vector<1x2x128xbf16> to vector<2x128xbf16>
    %443 = arith.extf %442 : vector<2x128xbf16> to vector<2x128xf32>
    %c0_232 = arith.constant 0 : index
    %c0_233 = arith.constant 0 : index
    %c0_234 = arith.constant 0 : index
    %444 = vector.load %arg4[%c0_232, %c0_233, %c0_234] : memref<2x2x32xbf16, #tpu.memory_space<vmem>>, vector<1x2x32xbf16>
    %445 = vector.shape_cast %444 : vector<1x2x32xbf16> to vector<2x32xbf16>
    %cst_235 = arith.constant dense<0.000000e+00> : vector<2x128xf32>
    %446 = tpu.matmul %445, %4, %cst_235 {dimension_numbers = #tpu.dot_dimension_numbers<[1], [0], [0], [1], [0, 0, 1, 1], [], []>} : vector<2x32xbf16>, vector<32x128xbf16>, vector<2x128xf32> -> vector<2x128xf32>
    %447 = arith.addf %443, %446 : vector<2x128xf32>
    %448 = vector.extract_strided_slice %447 {offsets = [0, 0], sizes = [2, 32], strides = [1, 1]} : vector<2x128xf32> to vector<2x32xf32>
    %cst_236 = arith.constant 5.000000e-01 : f32
    %449 = vector.broadcast %cst_236 : f32 to vector<2x32xf32>
    %450 = arith.mulf %449, %448 : vector<2x32xf32>
    %451 = math.tanh %450 : vector<2x32xf32>
    %cst_237 = arith.constant 5.000000e-01 : f32
    %452 = vector.broadcast %cst_237 : f32 to vector<2x32xf32>
    %453 = arith.mulf %452, %451 : vector<2x32xf32>
    %cst_238 = arith.constant 5.000000e-01 : f32
    %454 = vector.broadcast %cst_238 : f32 to vector<2x32xf32>
    %455 = arith.addf %453, %454 : vector<2x32xf32>
    %456 = vector.extract_strided_slice %447 {offsets = [0, 32], sizes = [2, 32], strides = [1, 1]} : vector<2x128xf32> to vector<2x32xf32>
    %cst_239 = arith.constant 5.000000e-01 : f32
    %457 = vector.broadcast %cst_239 : f32 to vector<2x32xf32>
    %458 = arith.mulf %457, %456 : vector<2x32xf32>
    %459 = math.tanh %458 : vector<2x32xf32>
    %cst_240 = arith.constant 5.000000e-01 : f32
    %460 = vector.broadcast %cst_240 : f32 to vector<2x32xf32>
    %461 = arith.mulf %460, %459 : vector<2x32xf32>
    %cst_241 = arith.constant 5.000000e-01 : f32
    %462 = vector.broadcast %cst_241 : f32 to vector<2x32xf32>
    %463 = arith.addf %461, %462 : vector<2x32xf32>
    %464 = vector.extract_strided_slice %447 {offsets = [0, 96], sizes = [2, 32], strides = [1, 1]} : vector<2x128xf32> to vector<2x32xf32>
    %cst_242 = arith.constant 5.000000e-01 : f32
    %465 = vector.broadcast %cst_242 : f32 to vector<2x32xf32>
    %466 = arith.mulf %465, %464 : vector<2x32xf32>
    %467 = math.tanh %466 : vector<2x32xf32>
    %cst_243 = arith.constant 5.000000e-01 : f32
    %468 = vector.broadcast %cst_243 : f32 to vector<2x32xf32>
    %469 = arith.mulf %468, %467 : vector<2x32xf32>
    %cst_244 = arith.constant 5.000000e-01 : f32
    %470 = vector.broadcast %cst_244 : f32 to vector<2x32xf32>
    %471 = arith.addf %469, %470 : vector<2x32xf32>
    %472 = vector.extract_strided_slice %447 {offsets = [0, 64], sizes = [2, 32], strides = [1, 1]} : vector<2x128xf32> to vector<2x32xf32>
    %473 = math.tanh %472 : vector<2x32xf32>
    %c0_245 = arith.constant 0 : index
    %c0_246 = arith.constant 0 : index
    %c0_247 = arith.constant 0 : index
    %474 = vector.load %arg5[%c0_245, %c0_246, %c0_247] : memref<2x2x32xf32, #tpu.memory_space<vmem>>, vector<1x2x32xf32>
    %475 = vector.shape_cast %474 : vector<1x2x32xf32> to vector<2x32xf32>
    %476 = arith.mulf %463, %475 : vector<2x32xf32>
    %477 = arith.mulf %455, %473 : vector<2x32xf32>
    %478 = arith.addf %476, %477 : vector<2x32xf32>
    %479 = math.tanh %478 : vector<2x32xf32>
    %480 = arith.mulf %471, %479 : vector<2x32xf32>
    %c0_248 = arith.constant 0 : index
    %c0_249 = arith.constant 0 : index
    %c0_250 = arith.constant 0 : index
    %481 = vector.load %arg5[%c0_248, %c0_249, %c0_250] : memref<2x2x32xf32, #tpu.memory_space<vmem>>, vector<1x2x32xf32>
    %482 = vector.shape_cast %481 : vector<1x2x32xf32> to vector<2x32xf32>
    %483 = vector.shape_cast %478 : vector<2x32xf32> to vector<1x2x32xf32>
    tpu.vector_store %arg5[%c0_248, %c0_249, %c0_250], %483 {strides = array<i32>} : memref<2x2x32xf32, #tpu.memory_space<vmem>>, vector<1x2x32xf32>,
    %484 = arith.truncf %480 : vector<2x32xf32> to vector<2x32xbf16>
    %c0_251 = arith.constant 0 : index
    %c0_252 = arith.constant 0 : index
    %c0_253 = arith.constant 0 : index
    %485 = vector.load %arg4[%c0_251, %c0_252, %c0_253] : memref<2x2x32xbf16, #tpu.memory_space<vmem>>, vector<1x2x32xbf16>
    %486 = vector.shape_cast %485 : vector<1x2x32xbf16> to vector<2x32xbf16>
    %487 = vector.shape_cast %484 : vector<2x32xbf16> to vector<1x2x32xbf16>
    tpu.vector_store %arg4[%c0_251, %c0_252, %c0_253], %487 {strides = array<i32>} : memref<2x2x32xbf16, #tpu.memory_space<vmem>>, vector<1x2x32xbf16>,
    %488 = vector.shape_cast %484 : vector<2x32xbf16> to vector<1x2x32xbf16>
    %c0_254 = arith.constant 0 : index
    %489 = arith.index_cast %c4_i32 : i32 to index
    %c0_255 = arith.constant 0 : index
    %c0_256 = arith.constant 0 : index
    %490 = vector.load %arg3[%c0_254, %489, %c0_255, %c0_256] : memref<2x8x2x32xbf16, #tpu.memory_space<vmem>>, vector<1x1x2x32xbf16>
    %491 = vector.shape_cast %490 : vector<1x1x2x32xbf16> to vector<1x2x32xbf16>
    %492 = vector.shape_cast %488 : vector<1x2x32xbf16> to vector<1x1x2x32xbf16>
    tpu.vector_store %arg3[%c0_254, %489, %c0_255, %c0_256], %492 {strides = array<i32>} : memref<2x8x2x32xbf16, #tpu.memory_space<vmem>>, vector<1x1x2x32xbf16>,
    %c1_257 = arith.constant 1 : index
    %493 = arith.index_cast %c4_i32 : i32 to index
    %c0_258 = arith.constant 0 : index
    %c0_259 = arith.constant 0 : index
    %494 = vector.load %arg1[%c1_257, %493, %c0_258, %c0_259] : memref<2x8x2x128xbf16, #tpu.memory_space<vmem>>, vector<1x1x2x128xbf16>
    %495 = vector.shape_cast %494 : vector<1x1x2x128xbf16> to vector<1x2x128xbf16>
    %496 = vector.shape_cast %495 : vector<1x2x128xbf16> to vector<2x128xbf16>
    %497 = arith.extf %496 : vector<2x128xbf16> to vector<2x128xf32>
    %c1_260 = arith.constant 1 : index
    %c0_261 = arith.constant 0 : index
    %c0_262 = arith.constant 0 : index
    %498 = vector.load %arg4[%c1_260, %c0_261, %c0_262] : memref<2x2x32xbf16, #tpu.memory_space<vmem>>, vector<1x2x32xbf16>
    %499 = vector.shape_cast %498 : vector<1x2x32xbf16> to vector<2x32xbf16>
    %cst_263 = arith.constant dense<0.000000e+00> : vector<2x128xf32>
    %500 = tpu.matmul %499, %6, %cst_263 {dimension_numbers = #tpu.dot_dimension_numbers<[1], [0], [0], [1], [0, 0, 1, 1], [], []>} : vector<2x32xbf16>, vector<32x128xbf16>, vector<2x128xf32> -> vector<2x128xf32>
    %501 = arith.addf %497, %500 : vector<2x128xf32>
    %502 = vector.extract_strided_slice %501 {offsets = [0, 0], sizes = [2, 32], strides = [1, 1]} : vector<2x128xf32> to vector<2x32xf32>
    %cst_264 = arith.constant 5.000000e-01 : f32
    %503 = vector.broadcast %cst_264 : f32 to vector<2x32xf32>
    %504 = arith.mulf %503, %502 : vector<2x32xf32>
    %505 = math.tanh %504 : vector<2x32xf32>
    %cst_265 = arith.constant 5.000000e-01 : f32
    %506 = vector.broadcast %cst_265 : f32 to vector<2x32xf32>
    %507 = arith.mulf %506, %505 : vector<2x32xf32>
    %cst_266 = arith.constant 5.000000e-01 : f32
    %508 = vector.broadcast %cst_266 : f32 to vector<2x32xf32>
    %509 = arith.addf %507, %508 : vector<2x32xf32>
    %510 = vector.extract_strided_slice %501 {offsets = [0, 32], sizes = [2, 32], strides = [1, 1]} : vector<2x128xf32> to vector<2x32xf32>
    %cst_267 = arith.constant 5.000000e-01 : f32
    %511 = vector.broadcast %cst_267 : f32 to vector<2x32xf32>
    %512 = arith.mulf %511, %510 : vector<2x32xf32>
    %513 = math.tanh %512 : vector<2x32xf32>
    %cst_268 = arith.constant 5.000000e-01 : f32
    %514 = vector.broadcast %cst_268 : f32 to vector<2x32xf32>
    %515 = arith.mulf %514, %513 : vector<2x32xf32>
    %cst_269 = arith.constant 5.000000e-01 : f32
    %516 = vector.broadcast %cst_269 : f32 to vector<2x32xf32>
    %517 = arith.addf %515, %516 : vector<2x32xf32>
    %518 = vector.extract_strided_slice %501 {offsets = [0, 96], sizes = [2, 32], strides = [1, 1]} : vector<2x128xf32> to vector<2x32xf32>
    %cst_270 = arith.constant 5.000000e-01 : f32
    %519 = vector.broadcast %cst_270 : f32 to vector<2x32xf32>
    %520 = arith.mulf %519, %518 : vector<2x32xf32>
    %521 = math.tanh %520 : vector<2x32xf32>
    %cst_271 = arith.constant 5.000000e-01 : f32
    %522 = vector.broadcast %cst_271 : f32 to vector<2x32xf32>
    %523 = arith.mulf %522, %521 : vector<2x32xf32>
    %cst_272 = arith.constant 5.000000e-01 : f32
    %524 = vector.broadcast %cst_272 : f32 to vector<2x32xf32>
    %525 = arith.addf %523, %524 : vector<2x32xf32>
    %526 = vector.extract_strided_slice %501 {offsets = [0, 64], sizes = [2, 32], strides = [1, 1]} : vector<2x128xf32> to vector<2x32xf32>
    %527 = math.tanh %526 : vector<2x32xf32>
    %c1_273 = arith.constant 1 : index
    %c0_274 = arith.constant 0 : index
    %c0_275 = arith.constant 0 : index
    %528 = vector.load %arg5[%c1_273, %c0_274, %c0_275] : memref<2x2x32xf32, #tpu.memory_space<vmem>>, vector<1x2x32xf32>
    %529 = vector.shape_cast %528 : vector<1x2x32xf32> to vector<2x32xf32>
    %530 = arith.mulf %517, %529 : vector<2x32xf32>
    %531 = arith.mulf %509, %527 : vector<2x32xf32>
    %532 = arith.addf %530, %531 : vector<2x32xf32>
    %533 = math.tanh %532 : vector<2x32xf32>
    %534 = arith.mulf %525, %533 : vector<2x32xf32>
    %c1_276 = arith.constant 1 : index
    %c0_277 = arith.constant 0 : index
    %c0_278 = arith.constant 0 : index
    %535 = vector.load %arg5[%c1_276, %c0_277, %c0_278] : memref<2x2x32xf32, #tpu.memory_space<vmem>>, vector<1x2x32xf32>
    %536 = vector.shape_cast %535 : vector<1x2x32xf32> to vector<2x32xf32>
    %537 = vector.shape_cast %532 : vector<2x32xf32> to vector<1x2x32xf32>
    tpu.vector_store %arg5[%c1_276, %c0_277, %c0_278], %537 {strides = array<i32>} : memref<2x2x32xf32, #tpu.memory_space<vmem>>, vector<1x2x32xf32>,
    %538 = arith.truncf %534 : vector<2x32xf32> to vector<2x32xbf16>
    %c1_279 = arith.constant 1 : index
    %c0_280 = arith.constant 0 : index
    %c0_281 = arith.constant 0 : index
    %539 = vector.load %arg4[%c1_279, %c0_280, %c0_281] : memref<2x2x32xbf16, #tpu.memory_space<vmem>>, vector<1x2x32xbf16>
    %540 = vector.shape_cast %539 : vector<1x2x32xbf16> to vector<2x32xbf16>
    %541 = vector.shape_cast %538 : vector<2x32xbf16> to vector<1x2x32xbf16>
    tpu.vector_store %arg4[%c1_279, %c0_280, %c0_281], %541 {strides = array<i32>} : memref<2x2x32xbf16, #tpu.memory_space<vmem>>, vector<1x2x32xbf16>,
    %542 = vector.shape_cast %538 : vector<2x32xbf16> to vector<1x2x32xbf16>
    %c1_282 = arith.constant 1 : index
    %543 = arith.index_cast %c4_i32 : i32 to index
    %c0_283 = arith.constant 0 : index
    %c0_284 = arith.constant 0 : index
    %544 = vector.load %arg3[%c1_282, %543, %c0_283, %c0_284] : memref<2x8x2x32xbf16, #tpu.memory_space<vmem>>, vector<1x1x2x32xbf16>
    %545 = vector.shape_cast %544 : vector<1x1x2x32xbf16> to vector<1x2x32xbf16>
    %546 = vector.shape_cast %542 : vector<1x2x32xbf16> to vector<1x1x2x32xbf16>
    tpu.vector_store %arg3[%c1_282, %543, %c0_283, %c0_284], %546 {strides = array<i32>} : memref<2x8x2x32xbf16, #tpu.memory_space<vmem>>, vector<1x1x2x32xbf16>,
    %c5_i32 = arith.constant 5 : i32
    %c0_285 = arith.constant 0 : index
    %547 = arith.index_cast %c5_i32 : i32 to index
    %c0_286 = arith.constant 0 : index
    %c0_287 = arith.constant 0 : index
    %548 = vector.load %arg1[%c0_285, %547, %c0_286, %c0_287] : memref<2x8x2x128xbf16, #tpu.memory_space<vmem>>, vector<1x1x2x128xbf16>
    %549 = vector.shape_cast %548 : vector<1x1x2x128xbf16> to vector<1x2x128xbf16>
    %550 = vector.shape_cast %549 : vector<1x2x128xbf16> to vector<2x128xbf16>
    %551 = arith.extf %550 : vector<2x128xbf16> to vector<2x128xf32>
    %c0_288 = arith.constant 0 : index
    %c0_289 = arith.constant 0 : index
    %c0_290 = arith.constant 0 : index
    %552 = vector.load %arg4[%c0_288, %c0_289, %c0_290] : memref<2x2x32xbf16, #tpu.memory_space<vmem>>, vector<1x2x32xbf16>
    %553 = vector.shape_cast %552 : vector<1x2x32xbf16> to vector<2x32xbf16>
    %cst_291 = arith.constant dense<0.000000e+00> : vector<2x128xf32>
    %554 = tpu.matmul %553, %4, %cst_291 {dimension_numbers = #tpu.dot_dimension_numbers<[1], [0], [0], [1], [0, 0, 1, 1], [], []>} : vector<2x32xbf16>, vector<32x128xbf16>, vector<2x128xf32> -> vector<2x128xf32>
    %555 = arith.addf %551, %554 : vector<2x128xf32>
    %556 = vector.extract_strided_slice %555 {offsets = [0, 0], sizes = [2, 32], strides = [1, 1]} : vector<2x128xf32> to vector<2x32xf32>
    %cst_292 = arith.constant 5.000000e-01 : f32
    %557 = vector.broadcast %cst_292 : f32 to vector<2x32xf32>
    %558 = arith.mulf %557, %556 : vector<2x32xf32>
    %559 = math.tanh %558 : vector<2x32xf32>
    %cst_293 = arith.constant 5.000000e-01 : f32
    %560 = vector.broadcast %cst_293 : f32 to vector<2x32xf32>
    %561 = arith.mulf %560, %559 : vector<2x32xf32>
    %cst_294 = arith.constant 5.000000e-01 : f32
    %562 = vector.broadcast %cst_294 : f32 to vector<2x32xf32>
    %563 = arith.addf %561, %562 : vector<2x32xf32>
    %564 = vector.extract_strided_slice %555 {offsets = [0, 32], sizes = [2, 32], strides = [1, 1]} : vector<2x128xf32> to vector<2x32xf32>
    %cst_295 = arith.constant 5.000000e-01 : f32
    %565 = vector.broadcast %cst_295 : f32 to vector<2x32xf32>
    %566 = arith.mulf %565, %564 : vector<2x32xf32>
    %567 = math.tanh %566 : vector<2x32xf32>
    %cst_296 = arith.constant 5.000000e-01 : f32
    %568 = vector.broadcast %cst_296 : f32 to vector<2x32xf32>
    %569 = arith.mulf %568, %567 : vector<2x32xf32>
    %cst_297 = arith.constant 5.000000e-01 : f32
    %570 = vector.broadcast %cst_297 : f32 to vector<2x32xf32>
    %571 = arith.addf %569, %570 : vector<2x32xf32>
    %572 = vector.extract_strided_slice %555 {offsets = [0, 96], sizes = [2, 32], strides = [1, 1]} : vector<2x128xf32> to vector<2x32xf32>
    %cst_298 = arith.constant 5.000000e-01 : f32
    %573 = vector.broadcast %cst_298 : f32 to vector<2x32xf32>
    %574 = arith.mulf %573, %572 : vector<2x32xf32>
    %575 = math.tanh %574 : vector<2x32xf32>
    %cst_299 = arith.constant 5.000000e-01 : f32
    %576 = vector.broadcast %cst_299 : f32 to vector<2x32xf32>
    %577 = arith.mulf %576, %575 : vector<2x32xf32>
    %cst_300 = arith.constant 5.000000e-01 : f32
    %578 = vector.broadcast %cst_300 : f32 to vector<2x32xf32>
    %579 = arith.addf %577, %578 : vector<2x32xf32>
    %580 = vector.extract_strided_slice %555 {offsets = [0, 64], sizes = [2, 32], strides = [1, 1]} : vector<2x128xf32> to vector<2x32xf32>
    %581 = math.tanh %580 : vector<2x32xf32>
    %c0_301 = arith.constant 0 : index
    %c0_302 = arith.constant 0 : index
    %c0_303 = arith.constant 0 : index
    %582 = vector.load %arg5[%c0_301, %c0_302, %c0_303] : memref<2x2x32xf32, #tpu.memory_space<vmem>>, vector<1x2x32xf32>
    %583 = vector.shape_cast %582 : vector<1x2x32xf32> to vector<2x32xf32>
    %584 = arith.mulf %571, %583 : vector<2x32xf32>
    %585 = arith.mulf %563, %581 : vector<2x32xf32>
    %586 = arith.addf %584, %585 : vector<2x32xf32>
    %587 = math.tanh %586 : vector<2x32xf32>
    %588 = arith.mulf %579, %587 : vector<2x32xf32>
    %c0_304 = arith.constant 0 : index
    %c0_305 = arith.constant 0 : index
    %c0_306 = arith.constant 0 : index
    %589 = vector.load %arg5[%c0_304, %c0_305, %c0_306] : memref<2x2x32xf32, #tpu.memory_space<vmem>>, vector<1x2x32xf32>
    %590 = vector.shape_cast %589 : vector<1x2x32xf32> to vector<2x32xf32>
    %591 = vector.shape_cast %586 : vector<2x32xf32> to vector<1x2x32xf32>
    tpu.vector_store %arg5[%c0_304, %c0_305, %c0_306], %591 {strides = array<i32>} : memref<2x2x32xf32, #tpu.memory_space<vmem>>, vector<1x2x32xf32>,
    %592 = arith.truncf %588 : vector<2x32xf32> to vector<2x32xbf16>
    %c0_307 = arith.constant 0 : index
    %c0_308 = arith.constant 0 : index
    %c0_309 = arith.constant 0 : index
    %593 = vector.load %arg4[%c0_307, %c0_308, %c0_309] : memref<2x2x32xbf16, #tpu.memory_space<vmem>>, vector<1x2x32xbf16>
    %594 = vector.shape_cast %593 : vector<1x2x32xbf16> to vector<2x32xbf16>
    %595 = vector.shape_cast %592 : vector<2x32xbf16> to vector<1x2x32xbf16>
    tpu.vector_store %arg4[%c0_307, %c0_308, %c0_309], %595 {strides = array<i32>} : memref<2x2x32xbf16, #tpu.memory_space<vmem>>, vector<1x2x32xbf16>,
    %596 = vector.shape_cast %592 : vector<2x32xbf16> to vector<1x2x32xbf16>
    %c0_310 = arith.constant 0 : index
    %597 = arith.index_cast %c5_i32 : i32 to index
    %c0_311 = arith.constant 0 : index
    %c0_312 = arith.constant 0 : index
    %598 = vector.load %arg3[%c0_310, %597, %c0_311, %c0_312] : memref<2x8x2x32xbf16, #tpu.memory_space<vmem>>, vector<1x1x2x32xbf16>
    %599 = vector.shape_cast %598 : vector<1x1x2x32xbf16> to vector<1x2x32xbf16>
    %600 = vector.shape_cast %596 : vector<1x2x32xbf16> to vector<1x1x2x32xbf16>
    tpu.vector_store %arg3[%c0_310, %597, %c0_311, %c0_312], %600 {strides = array<i32>} : memref<2x8x2x32xbf16, #tpu.memory_space<vmem>>, vector<1x1x2x32xbf16>,
    %c1_313 = arith.constant 1 : index
    %601 = arith.index_cast %c5_i32 : i32 to index
    %c0_314 = arith.constant 0 : index
    %c0_315 = arith.constant 0 : index
    %602 = vector.load %arg1[%c1_313, %601, %c0_314, %c0_315] : memref<2x8x2x128xbf16, #tpu.memory_space<vmem>>, vector<1x1x2x128xbf16>
    %603 = vector.shape_cast %602 : vector<1x1x2x128xbf16> to vector<1x2x128xbf16>
    %604 = vector.shape_cast %603 : vector<1x2x128xbf16> to vector<2x128xbf16>
    %605 = arith.extf %604 : vector<2x128xbf16> to vector<2x128xf32>
    %c1_316 = arith.constant 1 : index
    %c0_317 = arith.constant 0 : index
    %c0_318 = arith.constant 0 : index
    %606 = vector.load %arg4[%c1_316, %c0_317, %c0_318] : memref<2x2x32xbf16, #tpu.memory_space<vmem>>, vector<1x2x32xbf16>
    %607 = vector.shape_cast %606 : vector<1x2x32xbf16> to vector<2x32xbf16>
    %cst_319 = arith.constant dense<0.000000e+00> : vector<2x128xf32>
    %608 = tpu.matmul %607, %6, %cst_319 {dimension_numbers = #tpu.dot_dimension_numbers<[1], [0], [0], [1], [0, 0, 1, 1], [], []>} : vector<2x32xbf16>, vector<32x128xbf16>, vector<2x128xf32> -> vector<2x128xf32>
    %609 = arith.addf %605, %608 : vector<2x128xf32>
    %610 = vector.extract_strided_slice %609 {offsets = [0, 0], sizes = [2, 32], strides = [1, 1]} : vector<2x128xf32> to vector<2x32xf32>
    %cst_320 = arith.constant 5.000000e-01 : f32
    %611 = vector.broadcast %cst_320 : f32 to vector<2x32xf32>
    %612 = arith.mulf %611, %610 : vector<2x32xf32>
    %613 = math.tanh %612 : vector<2x32xf32>
    %cst_321 = arith.constant 5.000000e-01 : f32
    %614 = vector.broadcast %cst_321 : f32 to vector<2x32xf32>
    %615 = arith.mulf %614, %613 : vector<2x32xf32>
    %cst_322 = arith.constant 5.000000e-01 : f32
    %616 = vector.broadcast %cst_322 : f32 to vector<2x32xf32>
    %617 = arith.addf %615, %616 : vector<2x32xf32>
    %618 = vector.extract_strided_slice %609 {offsets = [0, 32], sizes = [2, 32], strides = [1, 1]} : vector<2x128xf32> to vector<2x32xf32>
    %cst_323 = arith.constant 5.000000e-01 : f32
    %619 = vector.broadcast %cst_323 : f32 to vector<2x32xf32>
    %620 = arith.mulf %619, %618 : vector<2x32xf32>
    %621 = math.tanh %620 : vector<2x32xf32>
    %cst_324 = arith.constant 5.000000e-01 : f32
    %622 = vector.broadcast %cst_324 : f32 to vector<2x32xf32>
    %623 = arith.mulf %622, %621 : vector<2x32xf32>
    %cst_325 = arith.constant 5.000000e-01 : f32
    %624 = vector.broadcast %cst_325 : f32 to vector<2x32xf32>
    %625 = arith.addf %623, %624 : vector<2x32xf32>
    %626 = vector.extract_strided_slice %609 {offsets = [0, 96], sizes = [2, 32], strides = [1, 1]} : vector<2x128xf32> to vector<2x32xf32>
    %cst_326 = arith.constant 5.000000e-01 : f32
    %627 = vector.broadcast %cst_326 : f32 to vector<2x32xf32>
    %628 = arith.mulf %627, %626 : vector<2x32xf32>
    %629 = math.tanh %628 : vector<2x32xf32>
    %cst_327 = arith.constant 5.000000e-01 : f32
    %630 = vector.broadcast %cst_327 : f32 to vector<2x32xf32>
    %631 = arith.mulf %630, %629 : vector<2x32xf32>
    %cst_328 = arith.constant 5.000000e-01 : f32
    %632 = vector.broadcast %cst_328 : f32 to vector<2x32xf32>
    %633 = arith.addf %631, %632 : vector<2x32xf32>
    %634 = vector.extract_strided_slice %609 {offsets = [0, 64], sizes = [2, 32], strides = [1, 1]} : vector<2x128xf32> to vector<2x32xf32>
    %635 = math.tanh %634 : vector<2x32xf32>
    %c1_329 = arith.constant 1 : index
    %c0_330 = arith.constant 0 : index
    %c0_331 = arith.constant 0 : index
    %636 = vector.load %arg5[%c1_329, %c0_330, %c0_331] : memref<2x2x32xf32, #tpu.memory_space<vmem>>, vector<1x2x32xf32>
    %637 = vector.shape_cast %636 : vector<1x2x32xf32> to vector<2x32xf32>
    %638 = arith.mulf %625, %637 : vector<2x32xf32>
    %639 = arith.mulf %617, %635 : vector<2x32xf32>
    %640 = arith.addf %638, %639 : vector<2x32xf32>
    %641 = math.tanh %640 : vector<2x32xf32>
    %642 = arith.mulf %633, %641 : vector<2x32xf32>
    %c1_332 = arith.constant 1 : index
    %c0_333 = arith.constant 0 : index
    %c0_334 = arith.constant 0 : index
    %643 = vector.load %arg5[%c1_332, %c0_333, %c0_334] : memref<2x2x32xf32, #tpu.memory_space<vmem>>, vector<1x2x32xf32>
    %644 = vector.shape_cast %643 : vector<1x2x32xf32> to vector<2x32xf32>
    %645 = vector.shape_cast %640 : vector<2x32xf32> to vector<1x2x32xf32>
    tpu.vector_store %arg5[%c1_332, %c0_333, %c0_334], %645 {strides = array<i32>} : memref<2x2x32xf32, #tpu.memory_space<vmem>>, vector<1x2x32xf32>,
    %646 = arith.truncf %642 : vector<2x32xf32> to vector<2x32xbf16>
    %c1_335 = arith.constant 1 : index
    %c0_336 = arith.constant 0 : index
    %c0_337 = arith.constant 0 : index
    %647 = vector.load %arg4[%c1_335, %c0_336, %c0_337] : memref<2x2x32xbf16, #tpu.memory_space<vmem>>, vector<1x2x32xbf16>
    %648 = vector.shape_cast %647 : vector<1x2x32xbf16> to vector<2x32xbf16>
    %649 = vector.shape_cast %646 : vector<2x32xbf16> to vector<1x2x32xbf16>
    tpu.vector_store %arg4[%c1_335, %c0_336, %c0_337], %649 {strides = array<i32>} : memref<2x2x32xbf16, #tpu.memory_space<vmem>>, vector<1x2x32xbf16>,
    %650 = vector.shape_cast %646 : vector<2x32xbf16> to vector<1x2x32xbf16>
    %c1_338 = arith.constant 1 : index
    %651 = arith.index_cast %c5_i32 : i32 to index
    %c0_339 = arith.constant 0 : index
    %c0_340 = arith.constant 0 : index
    %652 = vector.load %arg3[%c1_338, %651, %c0_339, %c0_340] : memref<2x8x2x32xbf16, #tpu.memory_space<vmem>>, vector<1x1x2x32xbf16>
    %653 = vector.shape_cast %652 : vector<1x1x2x32xbf16> to vector<1x2x32xbf16>
    %654 = vector.shape_cast %650 : vector<1x2x32xbf16> to vector<1x1x2x32xbf16>
    tpu.vector_store %arg3[%c1_338, %651, %c0_339, %c0_340], %654 {strides = array<i32>} : memref<2x8x2x32xbf16, #tpu.memory_space<vmem>>, vector<1x1x2x32xbf16>,
    %c6_i32 = arith.constant 6 : i32
    %c0_341 = arith.constant 0 : index
    %655 = arith.index_cast %c6_i32 : i32 to index
    %c0_342 = arith.constant 0 : index
    %c0_343 = arith.constant 0 : index
    %656 = vector.load %arg1[%c0_341, %655, %c0_342, %c0_343] : memref<2x8x2x128xbf16, #tpu.memory_space<vmem>>, vector<1x1x2x128xbf16>
    %657 = vector.shape_cast %656 : vector<1x1x2x128xbf16> to vector<1x2x128xbf16>
    %658 = vector.shape_cast %657 : vector<1x2x128xbf16> to vector<2x128xbf16>
    %659 = arith.extf %658 : vector<2x128xbf16> to vector<2x128xf32>
    %c0_344 = arith.constant 0 : index
    %c0_345 = arith.constant 0 : index
    %c0_346 = arith.constant 0 : index
    %660 = vector.load %arg4[%c0_344, %c0_345, %c0_346] : memref<2x2x32xbf16, #tpu.memory_space<vmem>>, vector<1x2x32xbf16>
    %661 = vector.shape_cast %660 : vector<1x2x32xbf16> to vector<2x32xbf16>
    %cst_347 = arith.constant dense<0.000000e+00> : vector<2x128xf32>
    %662 = tpu.matmul %661, %4, %cst_347 {dimension_numbers = #tpu.dot_dimension_numbers<[1], [0], [0], [1], [0, 0, 1, 1], [], []>} : vector<2x32xbf16>, vector<32x128xbf16>, vector<2x128xf32> -> vector<2x128xf32>
    %663 = arith.addf %659, %662 : vector<2x128xf32>
    %664 = vector.extract_strided_slice %663 {offsets = [0, 0], sizes = [2, 32], strides = [1, 1]} : vector<2x128xf32> to vector<2x32xf32>
    %cst_348 = arith.constant 5.000000e-01 : f32
    %665 = vector.broadcast %cst_348 : f32 to vector<2x32xf32>
    %666 = arith.mulf %665, %664 : vector<2x32xf32>
    %667 = math.tanh %666 : vector<2x32xf32>
    %cst_349 = arith.constant 5.000000e-01 : f32
    %668 = vector.broadcast %cst_349 : f32 to vector<2x32xf32>
    %669 = arith.mulf %668, %667 : vector<2x32xf32>
    %cst_350 = arith.constant 5.000000e-01 : f32
    %670 = vector.broadcast %cst_350 : f32 to vector<2x32xf32>
    %671 = arith.addf %669, %670 : vector<2x32xf32>
    %672 = vector.extract_strided_slice %663 {offsets = [0, 32], sizes = [2, 32], strides = [1, 1]} : vector<2x128xf32> to vector<2x32xf32>
    %cst_351 = arith.constant 5.000000e-01 : f32
    %673 = vector.broadcast %cst_351 : f32 to vector<2x32xf32>
    %674 = arith.mulf %673, %672 : vector<2x32xf32>
    %675 = math.tanh %674 : vector<2x32xf32>
    %cst_352 = arith.constant 5.000000e-01 : f32
    %676 = vector.broadcast %cst_352 : f32 to vector<2x32xf32>
    %677 = arith.mulf %676, %675 : vector<2x32xf32>
    %cst_353 = arith.constant 5.000000e-01 : f32
    %678 = vector.broadcast %cst_353 : f32 to vector<2x32xf32>
    %679 = arith.addf %677, %678 : vector<2x32xf32>
    %680 = vector.extract_strided_slice %663 {offsets = [0, 96], sizes = [2, 32], strides = [1, 1]} : vector<2x128xf32> to vector<2x32xf32>
    %cst_354 = arith.constant 5.000000e-01 : f32
    %681 = vector.broadcast %cst_354 : f32 to vector<2x32xf32>
    %682 = arith.mulf %681, %680 : vector<2x32xf32>
    %683 = math.tanh %682 : vector<2x32xf32>
    %cst_355 = arith.constant 5.000000e-01 : f32
    %684 = vector.broadcast %cst_355 : f32 to vector<2x32xf32>
    %685 = arith.mulf %684, %683 : vector<2x32xf32>
    %cst_356 = arith.constant 5.000000e-01 : f32
    %686 = vector.broadcast %cst_356 : f32 to vector<2x32xf32>
    %687 = arith.addf %685, %686 : vector<2x32xf32>
    %688 = vector.extract_strided_slice %663 {offsets = [0, 64], sizes = [2, 32], strides = [1, 1]} : vector<2x128xf32> to vector<2x32xf32>
    %689 = math.tanh %688 : vector<2x32xf32>
    %c0_357 = arith.constant 0 : index
    %c0_358 = arith.constant 0 : index
    %c0_359 = arith.constant 0 : index
    %690 = vector.load %arg5[%c0_357, %c0_358, %c0_359] : memref<2x2x32xf32, #tpu.memory_space<vmem>>, vector<1x2x32xf32>
    %691 = vector.shape_cast %690 : vector<1x2x32xf32> to vector<2x32xf32>
    %692 = arith.mulf %679, %691 : vector<2x32xf32>
    %693 = arith.mulf %671, %689 : vector<2x32xf32>
    %694 = arith.addf %692, %693 : vector<2x32xf32>
    %695 = math.tanh %694 : vector<2x32xf32>
    %696 = arith.mulf %687, %695 : vector<2x32xf32>
    %c0_360 = arith.constant 0 : index
    %c0_361 = arith.constant 0 : index
    %c0_362 = arith.constant 0 : index
    %697 = vector.load %arg5[%c0_360, %c0_361, %c0_362] : memref<2x2x32xf32, #tpu.memory_space<vmem>>, vector<1x2x32xf32>
    %698 = vector.shape_cast %697 : vector<1x2x32xf32> to vector<2x32xf32>
    %699 = vector.shape_cast %694 : vector<2x32xf32> to vector<1x2x32xf32>
    tpu.vector_store %arg5[%c0_360, %c0_361, %c0_362], %699 {strides = array<i32>} : memref<2x2x32xf32, #tpu.memory_space<vmem>>, vector<1x2x32xf32>,
    %700 = arith.truncf %696 : vector<2x32xf32> to vector<2x32xbf16>
    %c0_363 = arith.constant 0 : index
    %c0_364 = arith.constant 0 : index
    %c0_365 = arith.constant 0 : index
    %701 = vector.load %arg4[%c0_363, %c0_364, %c0_365] : memref<2x2x32xbf16, #tpu.memory_space<vmem>>, vector<1x2x32xbf16>
    %702 = vector.shape_cast %701 : vector<1x2x32xbf16> to vector<2x32xbf16>
    %703 = vector.shape_cast %700 : vector<2x32xbf16> to vector<1x2x32xbf16>
    tpu.vector_store %arg4[%c0_363, %c0_364, %c0_365], %703 {strides = array<i32>} : memref<2x2x32xbf16, #tpu.memory_space<vmem>>, vector<1x2x32xbf16>,
    %704 = vector.shape_cast %700 : vector<2x32xbf16> to vector<1x2x32xbf16>
    %c0_366 = arith.constant 0 : index
    %705 = arith.index_cast %c6_i32 : i32 to index
    %c0_367 = arith.constant 0 : index
    %c0_368 = arith.constant 0 : index
    %706 = vector.load %arg3[%c0_366, %705, %c0_367, %c0_368] : memref<2x8x2x32xbf16, #tpu.memory_space<vmem>>, vector<1x1x2x32xbf16>
    %707 = vector.shape_cast %706 : vector<1x1x2x32xbf16> to vector<1x2x32xbf16>
    %708 = vector.shape_cast %704 : vector<1x2x32xbf16> to vector<1x1x2x32xbf16>
    tpu.vector_store %arg3[%c0_366, %705, %c0_367, %c0_368], %708 {strides = array<i32>} : memref<2x8x2x32xbf16, #tpu.memory_space<vmem>>, vector<1x1x2x32xbf16>,
    %c1_369 = arith.constant 1 : index
    %709 = arith.index_cast %c6_i32 : i32 to index
    %c0_370 = arith.constant 0 : index
    %c0_371 = arith.constant 0 : index
    %710 = vector.load %arg1[%c1_369, %709, %c0_370, %c0_371] : memref<2x8x2x128xbf16, #tpu.memory_space<vmem>>, vector<1x1x2x128xbf16>
    %711 = vector.shape_cast %710 : vector<1x1x2x128xbf16> to vector<1x2x128xbf16>
    %712 = vector.shape_cast %711 : vector<1x2x128xbf16> to vector<2x128xbf16>
    %713 = arith.extf %712 : vector<2x128xbf16> to vector<2x128xf32>
    %c1_372 = arith.constant 1 : index
    %c0_373 = arith.constant 0 : index
    %c0_374 = arith.constant 0 : index
    %714 = vector.load %arg4[%c1_372, %c0_373, %c0_374] : memref<2x2x32xbf16, #tpu.memory_space<vmem>>, vector<1x2x32xbf16>
    %715 = vector.shape_cast %714 : vector<1x2x32xbf16> to vector<2x32xbf16>
    %cst_375 = arith.constant dense<0.000000e+00> : vector<2x128xf32>
    %716 = tpu.matmul %715, %6, %cst_375 {dimension_numbers = #tpu.dot_dimension_numbers<[1], [0], [0], [1], [0, 0, 1, 1], [], []>} : vector<2x32xbf16>, vector<32x128xbf16>, vector<2x128xf32> -> vector<2x128xf32>
    %717 = arith.addf %713, %716 : vector<2x128xf32>
    %718 = vector.extract_strided_slice %717 {offsets = [0, 0], sizes = [2, 32], strides = [1, 1]} : vector<2x128xf32> to vector<2x32xf32>
    %cst_376 = arith.constant 5.000000e-01 : f32
    %719 = vector.broadcast %cst_376 : f32 to vector<2x32xf32>
    %720 = arith.mulf %719, %718 : vector<2x32xf32>
    %721 = math.tanh %720 : vector<2x32xf32>
    %cst_377 = arith.constant 5.000000e-01 : f32
    %722 = vector.broadcast %cst_377 : f32 to vector<2x32xf32>
    %723 = arith.mulf %722, %721 : vector<2x32xf32>
    %cst_378 = arith.constant 5.000000e-01 : f32
    %724 = vector.broadcast %cst_378 : f32 to vector<2x32xf32>
    %725 = arith.addf %723, %724 : vector<2x32xf32>
    %726 = vector.extract_strided_slice %717 {offsets = [0, 32], sizes = [2, 32], strides = [1, 1]} : vector<2x128xf32> to vector<2x32xf32>
    %cst_379 = arith.constant 5.000000e-01 : f32
    %727 = vector.broadcast %cst_379 : f32 to vector<2x32xf32>
    %728 = arith.mulf %727, %726 : vector<2x32xf32>
    %729 = math.tanh %728 : vector<2x32xf32>
    %cst_380 = arith.constant 5.000000e-01 : f32
    %730 = vector.broadcast %cst_380 : f32 to vector<2x32xf32>
    %731 = arith.mulf %730, %729 : vector<2x32xf32>
    %cst_381 = arith.constant 5.000000e-01 : f32
    %732 = vector.broadcast %cst_381 : f32 to vector<2x32xf32>
    %733 = arith.addf %731, %732 : vector<2x32xf32>
    %734 = vector.extract_strided_slice %717 {offsets = [0, 96], sizes = [2, 32], strides = [1, 1]} : vector<2x128xf32> to vector<2x32xf32>
    %cst_382 = arith.constant 5.000000e-01 : f32
    %735 = vector.broadcast %cst_382 : f32 to vector<2x32xf32>
    %736 = arith.mulf %735, %734 : vector<2x32xf32>
    %737 = math.tanh %736 : vector<2x32xf32>
    %cst_383 = arith.constant 5.000000e-01 : f32
    %738 = vector.broadcast %cst_383 : f32 to vector<2x32xf32>
    %739 = arith.mulf %738, %737 : vector<2x32xf32>
    %cst_384 = arith.constant 5.000000e-01 : f32
    %740 = vector.broadcast %cst_384 : f32 to vector<2x32xf32>
    %741 = arith.addf %739, %740 : vector<2x32xf32>
    %742 = vector.extract_strided_slice %717 {offsets = [0, 64], sizes = [2, 32], strides = [1, 1]} : vector<2x128xf32> to vector<2x32xf32>
    %743 = math.tanh %742 : vector<2x32xf32>
    %c1_385 = arith.constant 1 : index
    %c0_386 = arith.constant 0 : index
    %c0_387 = arith.constant 0 : index
    %744 = vector.load %arg5[%c1_385, %c0_386, %c0_387] : memref<2x2x32xf32, #tpu.memory_space<vmem>>, vector<1x2x32xf32>
    %745 = vector.shape_cast %744 : vector<1x2x32xf32> to vector<2x32xf32>
    %746 = arith.mulf %733, %745 : vector<2x32xf32>
    %747 = arith.mulf %725, %743 : vector<2x32xf32>
    %748 = arith.addf %746, %747 : vector<2x32xf32>
    %749 = math.tanh %748 : vector<2x32xf32>
    %750 = arith.mulf %741, %749 : vector<2x32xf32>
    %c1_388 = arith.constant 1 : index
    %c0_389 = arith.constant 0 : index
    %c0_390 = arith.constant 0 : index
    %751 = vector.load %arg5[%c1_388, %c0_389, %c0_390] : memref<2x2x32xf32, #tpu.memory_space<vmem>>, vector<1x2x32xf32>
    %752 = vector.shape_cast %751 : vector<1x2x32xf32> to vector<2x32xf32>
    %753 = vector.shape_cast %748 : vector<2x32xf32> to vector<1x2x32xf32>
    tpu.vector_store %arg5[%c1_388, %c0_389, %c0_390], %753 {strides = array<i32>} : memref<2x2x32xf32, #tpu.memory_space<vmem>>, vector<1x2x32xf32>,
    %754 = arith.truncf %750 : vector<2x32xf32> to vector<2x32xbf16>
    %c1_391 = arith.constant 1 : index
    %c0_392 = arith.constant 0 : index
    %c0_393 = arith.constant 0 : index
    %755 = vector.load %arg4[%c1_391, %c0_392, %c0_393] : memref<2x2x32xbf16, #tpu.memory_space<vmem>>, vector<1x2x32xbf16>
    %756 = vector.shape_cast %755 : vector<1x2x32xbf16> to vector<2x32xbf16>
    %757 = vector.shape_cast %754 : vector<2x32xbf16> to vector<1x2x32xbf16>
    tpu.vector_store %arg4[%c1_391, %c0_392, %c0_393], %757 {strides = array<i32>} : memref<2x2x32xbf16, #tpu.memory_space<vmem>>, vector<1x2x32xbf16>,
    %758 = vector.shape_cast %754 : vector<2x32xbf16> to vector<1x2x32xbf16>
    %c1_394 = arith.constant 1 : index
    %759 = arith.index_cast %c6_i32 : i32 to index
    %c0_395 = arith.constant 0 : index
    %c0_396 = arith.constant 0 : index
    %760 = vector.load %arg3[%c1_394, %759, %c0_395, %c0_396] : memref<2x8x2x32xbf16, #tpu.memory_space<vmem>>, vector<1x1x2x32xbf16>
    %761 = vector.shape_cast %760 : vector<1x1x2x32xbf16> to vector<1x2x32xbf16>
    %762 = vector.shape_cast %758 : vector<1x2x32xbf16> to vector<1x1x2x32xbf16>
    tpu.vector_store %arg3[%c1_394, %759, %c0_395, %c0_396], %762 {strides = array<i32>} : memref<2x8x2x32xbf16, #tpu.memory_space<vmem>>, vector<1x1x2x32xbf16>,
    %c7_i32 = arith.constant 7 : i32
    %c0_397 = arith.constant 0 : index
    %763 = arith.index_cast %c7_i32 : i32 to index
    %c0_398 = arith.constant 0 : index
    %c0_399 = arith.constant 0 : index
    %764 = vector.load %arg1[%c0_397, %763, %c0_398, %c0_399] : memref<2x8x2x128xbf16, #tpu.memory_space<vmem>>, vector<1x1x2x128xbf16>
    %765 = vector.shape_cast %764 : vector<1x1x2x128xbf16> to vector<1x2x128xbf16>
    %766 = vector.shape_cast %765 : vector<1x2x128xbf16> to vector<2x128xbf16>
    %767 = arith.extf %766 : vector<2x128xbf16> to vector<2x128xf32>
    %c0_400 = arith.constant 0 : index
    %c0_401 = arith.constant 0 : index
    %c0_402 = arith.constant 0 : index
    %768 = vector.load %arg4[%c0_400, %c0_401, %c0_402] : memref<2x2x32xbf16, #tpu.memory_space<vmem>>, vector<1x2x32xbf16>
    %769 = vector.shape_cast %768 : vector<1x2x32xbf16> to vector<2x32xbf16>
    %cst_403 = arith.constant dense<0.000000e+00> : vector<2x128xf32>
    %770 = tpu.matmul %769, %4, %cst_403 {dimension_numbers = #tpu.dot_dimension_numbers<[1], [0], [0], [1], [0, 0, 1, 1], [], []>} : vector<2x32xbf16>, vector<32x128xbf16>, vector<2x128xf32> -> vector<2x128xf32>
    %771 = arith.addf %767, %770 : vector<2x128xf32>
    %772 = vector.extract_strided_slice %771 {offsets = [0, 0], sizes = [2, 32], strides = [1, 1]} : vector<2x128xf32> to vector<2x32xf32>
    %cst_404 = arith.constant 5.000000e-01 : f32
    %773 = vector.broadcast %cst_404 : f32 to vector<2x32xf32>
    %774 = arith.mulf %773, %772 : vector<2x32xf32>
    %775 = math.tanh %774 : vector<2x32xf32>
    %cst_405 = arith.constant 5.000000e-01 : f32
    %776 = vector.broadcast %cst_405 : f32 to vector<2x32xf32>
    %777 = arith.mulf %776, %775 : vector<2x32xf32>
    %cst_406 = arith.constant 5.000000e-01 : f32
    %778 = vector.broadcast %cst_406 : f32 to vector<2x32xf32>
    %779 = arith.addf %777, %778 : vector<2x32xf32>
    %780 = vector.extract_strided_slice %771 {offsets = [0, 32], sizes = [2, 32], strides = [1, 1]} : vector<2x128xf32> to vector<2x32xf32>
    %cst_407 = arith.constant 5.000000e-01 : f32
    %781 = vector.broadcast %cst_407 : f32 to vector<2x32xf32>
    %782 = arith.mulf %781, %780 : vector<2x32xf32>
    %783 = math.tanh %782 : vector<2x32xf32>
    %cst_408 = arith.constant 5.000000e-01 : f32
    %784 = vector.broadcast %cst_408 : f32 to vector<2x32xf32>
    %785 = arith.mulf %784, %783 : vector<2x32xf32>
    %cst_409 = arith.constant 5.000000e-01 : f32
    %786 = vector.broadcast %cst_409 : f32 to vector<2x32xf32>
    %787 = arith.addf %785, %786 : vector<2x32xf32>
    %788 = vector.extract_strided_slice %771 {offsets = [0, 96], sizes = [2, 32], strides = [1, 1]} : vector<2x128xf32> to vector<2x32xf32>
    %cst_410 = arith.constant 5.000000e-01 : f32
    %789 = vector.broadcast %cst_410 : f32 to vector<2x32xf32>
    %790 = arith.mulf %789, %788 : vector<2x32xf32>
    %791 = math.tanh %790 : vector<2x32xf32>
    %cst_411 = arith.constant 5.000000e-01 : f32
    %792 = vector.broadcast %cst_411 : f32 to vector<2x32xf32>
    %793 = arith.mulf %792, %791 : vector<2x32xf32>
    %cst_412 = arith.constant 5.000000e-01 : f32
    %794 = vector.broadcast %cst_412 : f32 to vector<2x32xf32>
    %795 = arith.addf %793, %794 : vector<2x32xf32>
    %796 = vector.extract_strided_slice %771 {offsets = [0, 64], sizes = [2, 32], strides = [1, 1]} : vector<2x128xf32> to vector<2x32xf32>
    %797 = math.tanh %796 : vector<2x32xf32>
    %c0_413 = arith.constant 0 : index
    %c0_414 = arith.constant 0 : index
    %c0_415 = arith.constant 0 : index
    %798 = vector.load %arg5[%c0_413, %c0_414, %c0_415] : memref<2x2x32xf32, #tpu.memory_space<vmem>>, vector<1x2x32xf32>
    %799 = vector.shape_cast %798 : vector<1x2x32xf32> to vector<2x32xf32>
    %800 = arith.mulf %787, %799 : vector<2x32xf32>
    %801 = arith.mulf %779, %797 : vector<2x32xf32>
    %802 = arith.addf %800, %801 : vector<2x32xf32>
    %803 = math.tanh %802 : vector<2x32xf32>
    %804 = arith.mulf %795, %803 : vector<2x32xf32>
    %c0_416 = arith.constant 0 : index
    %c0_417 = arith.constant 0 : index
    %c0_418 = arith.constant 0 : index
    %805 = vector.load %arg5[%c0_416, %c0_417, %c0_418] : memref<2x2x32xf32, #tpu.memory_space<vmem>>, vector<1x2x32xf32>
    %806 = vector.shape_cast %805 : vector<1x2x32xf32> to vector<2x32xf32>
    %807 = vector.shape_cast %802 : vector<2x32xf32> to vector<1x2x32xf32>
    tpu.vector_store %arg5[%c0_416, %c0_417, %c0_418], %807 {strides = array<i32>} : memref<2x2x32xf32, #tpu.memory_space<vmem>>, vector<1x2x32xf32>,
    %808 = arith.truncf %804 : vector<2x32xf32> to vector<2x32xbf16>
    %c0_419 = arith.constant 0 : index
    %c0_420 = arith.constant 0 : index
    %c0_421 = arith.constant 0 : index
    %809 = vector.load %arg4[%c0_419, %c0_420, %c0_421] : memref<2x2x32xbf16, #tpu.memory_space<vmem>>, vector<1x2x32xbf16>
    %810 = vector.shape_cast %809 : vector<1x2x32xbf16> to vector<2x32xbf16>
    %811 = vector.shape_cast %808 : vector<2x32xbf16> to vector<1x2x32xbf16>
    tpu.vector_store %arg4[%c0_419, %c0_420, %c0_421], %811 {strides = array<i32>} : memref<2x2x32xbf16, #tpu.memory_space<vmem>>, vector<1x2x32xbf16>,
    %812 = vector.shape_cast %808 : vector<2x32xbf16> to vector<1x2x32xbf16>
    %c0_422 = arith.constant 0 : index
    %813 = arith.index_cast %c7_i32 : i32 to index
    %c0_423 = arith.constant 0 : index
    %c0_424 = arith.constant 0 : index
    %814 = vector.load %arg3[%c0_422, %813, %c0_423, %c0_424] : memref<2x8x2x32xbf16, #tpu.memory_space<vmem>>, vector<1x1x2x32xbf16>
    %815 = vector.shape_cast %814 : vector<1x1x2x32xbf16> to vector<1x2x32xbf16>
    %816 = vector.shape_cast %812 : vector<1x2x32xbf16> to vector<1x1x2x32xbf16>
    tpu.vector_store %arg3[%c0_422, %813, %c0_423, %c0_424], %816 {strides = array<i32>} : memref<2x8x2x32xbf16, #tpu.memory_space<vmem>>, vector<1x1x2x32xbf16>,
    %c1_425 = arith.constant 1 : index
    %817 = arith.index_cast %c7_i32 : i32 to index
    %c0_426 = arith.constant 0 : index
    %c0_427 = arith.constant 0 : index
    %818 = vector.load %arg1[%c1_425, %817, %c0_426, %c0_427] : memref<2x8x2x128xbf16, #tpu.memory_space<vmem>>, vector<1x1x2x128xbf16>
    %819 = vector.shape_cast %818 : vector<1x1x2x128xbf16> to vector<1x2x128xbf16>
    %820 = vector.shape_cast %819 : vector<1x2x128xbf16> to vector<2x128xbf16>
    %821 = arith.extf %820 : vector<2x128xbf16> to vector<2x128xf32>
    %c1_428 = arith.constant 1 : index
    %c0_429 = arith.constant 0 : index
    %c0_430 = arith.constant 0 : index
    %822 = vector.load %arg4[%c1_428, %c0_429, %c0_430] : memref<2x2x32xbf16, #tpu.memory_space<vmem>>, vector<1x2x32xbf16>
    %823 = vector.shape_cast %822 : vector<1x2x32xbf16> to vector<2x32xbf16>
    %cst_431 = arith.constant dense<0.000000e+00> : vector<2x128xf32>
    %824 = tpu.matmul %823, %6, %cst_431 {dimension_numbers = #tpu.dot_dimension_numbers<[1], [0], [0], [1], [0, 0, 1, 1], [], []>} : vector<2x32xbf16>, vector<32x128xbf16>, vector<2x128xf32> -> vector<2x128xf32>
    %825 = arith.addf %821, %824 : vector<2x128xf32>
    %826 = vector.extract_strided_slice %825 {offsets = [0, 0], sizes = [2, 32], strides = [1, 1]} : vector<2x128xf32> to vector<2x32xf32>
    %cst_432 = arith.constant 5.000000e-01 : f32
    %827 = vector.broadcast %cst_432 : f32 to vector<2x32xf32>
    %828 = arith.mulf %827, %826 : vector<2x32xf32>
    %829 = math.tanh %828 : vector<2x32xf32>
    %cst_433 = arith.constant 5.000000e-01 : f32
    %830 = vector.broadcast %cst_433 : f32 to vector<2x32xf32>
    %831 = arith.mulf %830, %829 : vector<2x32xf32>
    %cst_434 = arith.constant 5.000000e-01 : f32
    %832 = vector.broadcast %cst_434 : f32 to vector<2x32xf32>
    %833 = arith.addf %831, %832 : vector<2x32xf32>
    %834 = vector.extract_strided_slice %825 {offsets = [0, 32], sizes = [2, 32], strides = [1, 1]} : vector<2x128xf32> to vector<2x32xf32>
    %cst_435 = arith.constant 5.000000e-01 : f32
    %835 = vector.broadcast %cst_435 : f32 to vector<2x32xf32>
    %836 = arith.mulf %835, %834 : vector<2x32xf32>
    %837 = math.tanh %836 : vector<2x32xf32>
    %cst_436 = arith.constant 5.000000e-01 : f32
    %838 = vector.broadcast %cst_436 : f32 to vector<2x32xf32>
    %839 = arith.mulf %838, %837 : vector<2x32xf32>
    %cst_437 = arith.constant 5.000000e-01 : f32
    %840 = vector.broadcast %cst_437 : f32 to vector<2x32xf32>
    %841 = arith.addf %839, %840 : vector<2x32xf32>
    %842 = vector.extract_strided_slice %825 {offsets = [0, 96], sizes = [2, 32], strides = [1, 1]} : vector<2x128xf32> to vector<2x32xf32>
    %cst_438 = arith.constant 5.000000e-01 : f32
    %843 = vector.broadcast %cst_438 : f32 to vector<2x32xf32>
    %844 = arith.mulf %843, %842 : vector<2x32xf32>
    %845 = math.tanh %844 : vector<2x32xf32>
    %cst_439 = arith.constant 5.000000e-01 : f32
    %846 = vector.broadcast %cst_439 : f32 to vector<2x32xf32>
    %847 = arith.mulf %846, %845 : vector<2x32xf32>
    %cst_440 = arith.constant 5.000000e-01 : f32
    %848 = vector.broadcast %cst_440 : f32 to vector<2x32xf32>
    %849 = arith.addf %847, %848 : vector<2x32xf32>
    %850 = vector.extract_strided_slice %825 {offsets = [0, 64], sizes = [2, 32], strides = [1, 1]} : vector<2x128xf32> to vector<2x32xf32>
    %851 = math.tanh %850 : vector<2x32xf32>
    %c1_441 = arith.constant 1 : index
    %c0_442 = arith.constant 0 : index
    %c0_443 = arith.constant 0 : index
    %852 = vector.load %arg5[%c1_441, %c0_442, %c0_443] : memref<2x2x32xf32, #tpu.memory_space<vmem>>, vector<1x2x32xf32>
    %853 = vector.shape_cast %852 : vector<1x2x32xf32> to vector<2x32xf32>
    %854 = arith.mulf %841, %853 : vector<2x32xf32>
    %855 = arith.mulf %833, %851 : vector<2x32xf32>
    %856 = arith.addf %854, %855 : vector<2x32xf32>
    %857 = math.tanh %856 : vector<2x32xf32>
    %858 = arith.mulf %849, %857 : vector<2x32xf32>
    %c1_444 = arith.constant 1 : index
    %c0_445 = arith.constant 0 : index
    %c0_446 = arith.constant 0 : index
    %859 = vector.load %arg5[%c1_444, %c0_445, %c0_446] : memref<2x2x32xf32, #tpu.memory_space<vmem>>, vector<1x2x32xf32>
    %860 = vector.shape_cast %859 : vector<1x2x32xf32> to vector<2x32xf32>
    %861 = vector.shape_cast %856 : vector<2x32xf32> to vector<1x2x32xf32>
    tpu.vector_store %arg5[%c1_444, %c0_445, %c0_446], %861 {strides = array<i32>} : memref<2x2x32xf32, #tpu.memory_space<vmem>>, vector<1x2x32xf32>,
    %862 = arith.truncf %858 : vector<2x32xf32> to vector<2x32xbf16>
    %c1_447 = arith.constant 1 : index
    %c0_448 = arith.constant 0 : index
    %c0_449 = arith.constant 0 : index
    %863 = vector.load %arg4[%c1_447, %c0_448, %c0_449] : memref<2x2x32xbf16, #tpu.memory_space<vmem>>, vector<1x2x32xbf16>
    %864 = vector.shape_cast %863 : vector<1x2x32xbf16> to vector<2x32xbf16>
    %865 = vector.shape_cast %862 : vector<2x32xbf16> to vector<1x2x32xbf16>
    tpu.vector_store %arg4[%c1_447, %c0_448, %c0_449], %865 {strides = array<i32>} : memref<2x2x32xbf16, #tpu.memory_space<vmem>>, vector<1x2x32xbf16>,
    %866 = vector.shape_cast %862 : vector<2x32xbf16> to vector<1x2x32xbf16>
    %c1_450 = arith.constant 1 : index
    %867 = arith.index_cast %c7_i32 : i32 to index
    %c0_451 = arith.constant 0 : index
    %c0_452 = arith.constant 0 : index
    %868 = vector.load %arg3[%c1_450, %867, %c0_451, %c0_452] : memref<2x8x2x32xbf16, #tpu.memory_space<vmem>>, vector<1x1x2x32xbf16>
    %869 = vector.shape_cast %868 : vector<1x1x2x32xbf16> to vector<1x2x32xbf16>
    %870 = vector.shape_cast %866 : vector<1x2x32xbf16> to vector<1x1x2x32xbf16>
    tpu.vector_store %arg3[%c1_450, %867, %c0_451, %c0_452], %870 {strides = array<i32>} : memref<2x8x2x32xbf16, #tpu.memory_space<vmem>>, vector<1x1x2x32xbf16>,
    %c8_i32 = arith.constant 8 : i32
    return
  }
  func.func @transform_0(%arg0: i32) -> (i32, i32, i32, i32) {
    %c0_i32 = arith.constant 0 : i32
    %c0_i32_0 = arith.constant 0 : i32
    %c0_i32_1 = arith.constant 0 : i32
    %c0_i32_2 = arith.constant 0 : i32
    return %c0_i32, %arg0, %c0_i32_0, %c0_i32_1 : i32, i32, i32, i32
  }
  func.func @transform_1(%arg0: i32) -> (i32, i32, i32) {
    %c0_i32 = arith.constant 0 : i32
    %c0_i32_0 = arith.constant 0 : i32
    %c0_i32_1 = arith.constant 0 : i32
    %c0_i32_2 = arith.constant 0 : i32
    return %c0_i32, %c0_i32_0, %c0_i32_1 : i32, i32, i32
  }
  func.func @transform_2(%arg0: i32) -> (i32, i32, i32, i32) {
    %c0_i32 = arith.constant 0 : i32
    %c0_i32_0 = arith.constant 0 : i32
    %c0_i32_1 = arith.constant 0 : i32
    %c0_i32_2 = arith.constant 0 : i32
    return %c0_i32, %arg0, %c0_i32_0, %c0_i32_1 : i32, i32, i32, i32
  }
}

</mosaic_0001>

<llo_original>
// kernel: _blstm_forward_impl.1
$region0: #{_blstm_forward_impl.1}
  #allocation0 [shape = 'u32[]', space=smem, size = 0x4, offset = 0x4, fixed_abs, tag = 'smem constant byte address 0x4 - core index']
  #allocation1 [shape = 'u32[72,128]{1,0:T(1,128)}', space=vmem, size = 0x9000, scoped, tag = 'internal scratch']
  #allocation2 [shape = 'bf16[2,2,32]{2,1,0:T(2,128)(2,1)}', space=vmem, size = 0x400, scoped, tag = 'scratch operand']
  #allocation3 [shape = 'f32[2,2,32]{2,1,0:T(2,128)}', space=vmem, size = 0x800, scoped, tag = 'scratch operand']
  %s0 = inlined_call_operand.vmem [shape: bf16[2,8,2,128], index: 0, kind: input, shape index: {}]
  %s1 = inlined_call_operand.vmem [shape: bf16[2,32,128], index: 1, kind: input, shape index: {}]
  %s2 = inlined_call_operand.vmem [shape: bf16[2,8,2,32], index: 2, kind: output, shape index: {}]
  %s3 = sld [smem:[#allocation0]]
  $region22: #{_blstm_forward_impl.1} parent=0
    _
  %s5 = ssub.s32 1, %s3
  %s6 = scalar_select 0, %s5, %s3
  // Predicated region
  $region2: #{_blstm_forward_impl.1} parent=0 // pred_check
    _
  $region3: #{_blstm_forward_impl.1} parent=0 // pred_check_branch
    %8 = sbr.rel (0) target = $region5
  $region4: #{_blstm_forward_impl.1} parent=0 // pred_region
    _
  $region5: #{_blstm_forward_impl.1} parent=0 // pred_fallthru
    _
  // Predicated region
  $region6: #{_blstm_forward_impl.1} parent=0 // pred_check
    _
  $region7: #{_blstm_forward_impl.1} parent=0 // pred_check_branch
    %10 = sbr.rel (0) target = $region9
  $region8: #{_blstm_forward_impl.1} parent=0 // pred_region
    _
  $region9: #{_blstm_forward_impl.1} parent=0 // pred_fallthru
    _
  %p12 = scmp.eq.s32.totalorder 0, 0
  // Predicated region
  $region10: #{_blstm_forward_impl.1} parent=0 // pred_check
    %p13 = pneg %p12
  $region11: #{_blstm_forward_impl.1} parent=0 // pred_check_branch
    %15 = sbr.rel (%p13) target = $region13
  $region12: #{_blstm_forward_impl.1} parent=0 // pred_region
    %vm16 = vcmask 253952
    %17 = vst.msk [vmem:[#allocation2] sm:$0x1] %vm16, 0
    %18 = vst.msk [vmem:[#allocation2 + $0x1] sm:$0x1] %vm16, 0
    %vm19 = vcmask 254976
    %20 = vst.msk [vmem:[#allocation3] sm:$0x3] %vm19, 0.0
    %21 = vst.msk [vmem:[#allocation3 + $0x2] sm:$0x3] %vm19, 0.0
  $region13: #{_blstm_forward_impl.1} parent=0 // pred_fallthru
    _
  %v22 = vld [vmem:[%s1] sm:$0xf]
  %v23 = vld [vmem:[%s1 + $0x4] sm:$0xf]
  %v24 = vld [vmem:[%s1 + $0x8] sm:$0xf]
  %v25 = vld [vmem:[%s1 + $0xc] sm:$0xf]
  %s26 = scalar_lea.vmem %s1, 16
  %v27 = vld [vmem:[%s26] sm:$0xf]
  %v28 = vld [vmem:[%s26 + $0x4] sm:$0xf]
  %v29 = vld [vmem:[%s26 + $0x8] sm:$0xf]
  %v30 = vld [vmem:[%s26 + $0xc] sm:$0xf]
  %v31 = vld [vmem:[%s0] sm:$0x1]
  %v32 = vunpack.c.l.bf16 %v31
  %v33 = vld [vmem:[#allocation2] sm:$0x1]
  %v38 = vunpack.c.l.b16 %v22
  %v39 = vunpack.c.l.b16 %v23
  %v40 = vunpack.c.l.b16 %v24
  %v41 = vunpack.c.l.b16 %v25
  %v42 = vpack.c.b16 %v39, %v38
  %v43 = vpack.c.b16 %v41, %v40
  %vm46 = vcmask 261120
  %v48 = vsel %vm46, %v33, 0
  %50 = vmatpush.bf16.msra.mxu0 0
  %51 = vmatpush.bf16.msra.mxu0 0
  %52 = vmatpush.bf16.msra.mxu0 0
  %53 = vmatpush.bf16.msra.mxu0 0
  %54 = vmatpush.bf16.msra.mxu0 0
  %55 = vmatpush.bf16.msra.mxu0 0
  %56 = vmatpush.bf16.msra.mxu0 %v43
  %57 = vmatpush.bf16.msra.mxu0 %v42
  %58 = vmatmul.bf16.gmra.mxu0 %v48
  %v59 = vpop.f32.mrf.mxu0
  %v60 = vadd.f32 0.0, %v59
  %v61 = vpop.f32.mrf.mxu0
  %62 = vdwg.mxu0
  %v63 = vadd.f32 %v32, %v60
  %v64 = vmul.f32 %v63, 0.5
  %v65 = vtanh.pop %v64
  %v66 = vmul.f32 %v65, 0.5
  %v67 = vadd.f32 %v66, 0.5
  %v68 = vtanh.pop %v63
  %v69 = vld [vmem:[#allocation3] sm:$0x3]
  %71 = vrot.lane.b32.xlu0 %v69, 32
  %v72 = vpop.permute.xlu0 %71
  %v74 = vmul.f32 %v67, %v72
  %76 = vrot.lane.b32.xlu0 %v68, 64
  %v77 = vpop.permute.xlu0 %76
  %v79 = vmul.f32 %v67, %v77
  %81 = vrot.lane.b32.xlu0 %v79, 32
  %v82 = vpop.permute.xlu0 %81
  %v84 = vadd.f32 %v74, %v82
  %v85 = vtanh.pop %v84
  %87 = vrot.lane.b32.xlu0 %v85, 64
  %v88 = vpop.permute.xlu0 %87
  %v90 = vmul.f32 %v67, %v88
  %92 = vst [vmem:[#allocation1] ss:$4 sm:$0xff] %v84
  %v93 = vld.sshfl [vmem:[#allocation1] sm:$0xff pattern:$0x73625140]
  %94 = vrot.lane.b32.xlu0 %v93, 96
  %v95 = vpop.permute.xlu0 %94
  %vm97 = vcmask 254976
  %98 = vst.msk [vmem:[#allocation3] sm:$0x3] %vm97, %v95
  %v99 = vpack.c.bf16 %v90, %v90
  %v101 = vrot.slane %v99, 3
  %vm102 = vcmask 1040384
  %v105 = vsel %vm102, %v99, %v101
  %107 = vrot.lane.b32.xlu0 %v105, 32
  %v108 = vpop.permute.xlu0 %107
  %vm110 = vcmask 253952
  %111 = vst.msk [vmem:[#allocation2] sm:$0x1] %vm110, %v108
  %112 = vst.msk [vmem:[%s2] sm:$0x1] %vm110, %v108
  %s113 = scalar_lea.vmem %s0, 8
  %v114 = vld [vmem:[%s113] sm:$0x1]
  %v115 = vunpack.c.l.bf16 %v114
  %s116 = scalar_lea.vmem [#allocation2], 1
  %v117 = vld [vmem:[%s116] sm:$0x1]
  %v122 = vunpack.c.l.b16 %v27
  %v123 = vunpack.c.l.b16 %v28
  %v124 = vunpack.c.l.b16 %v29
  %v125 = vunpack.c.l.b16 %v30
  %v126 = vpack.c.b16 %v123, %v122
  %v127 = vpack.c.b16 %v125, %v124
  %v131 = vsel %vm46, %v117, 0
  %133 = vmatpush.bf16.msra.mxu0 0
  %134 = vmatpush.bf16.msra.mxu0 0
  %135 = vmatpush.bf16.msra.mxu0 0
  %136 = vmatpush.bf16.msra.mxu0 0
  %137 = vmatpush.bf16.msra.mxu0 0
  %138 = vmatpush.bf16.msra.mxu0 0
  %139 = vmatpush.bf16.msra.mxu0 %v127
  %140 = vmatpush.bf16.msra.mxu0 %v126
  %141 = vmatmul.bf16.gmra.mxu0 %v131
  %v142 = vpop.f32.mrf.mxu0
  %v143 = vadd.f32 0.0, %v142
  %v144 = vpop.f32.mrf.mxu0
  %145 = vdwg.mxu0
  %v146 = vadd.f32 %v115, %v143
  %v147 = vmul.f32 %v146, 0.5
  %v148 = vtanh.pop %v147
  %v149 = vmul.f32 %v148, 0.5
  %v150 = vadd.f32 %v149, 0.5
  %v151 = vtanh.pop %v146
  %s152 = scalar_lea.vmem [#allocation3], 2
  %v153 = vld [vmem:[%s152] sm:$0x3]
  %155 = vrot.lane.b32.xlu0 %v153, 32
  %v156 = vpop.permute.xlu0 %155
  %v158 = vmul.f32 %v150, %v156
  %160 = vrot.lane.b32.xlu0 %v151, 64
  %v161 = vpop.permute.xlu0 %160
  %v163 = vmul.f32 %v150, %v161
  %165 = vrot.lane.b32.xlu0 %v163, 32
  %v166 = vpop.permute.xlu0 %165
  %v168 = vadd.f32 %v158, %v166
  %v169 = vtanh.pop %v168
  %171 = vrot.lane.b32.xlu0 %v169, 64
  %v172 = vpop.permute.xlu0 %171
  %v174 = vmul.f32 %v150, %v172
  %176 = vst [vmem:[#allocation1] ss:$4 sm:$0xff] %v168
  %v177 = vld.sshfl [vmem:[#allocation1] sm:$0xff pattern:$0x73625140]
  %178 = vrot.lane.b32.xlu0 %v177, 96
  %v179 = vpop.permute.xlu0 %178
  %181 = vst.msk [vmem:[%s152] sm:$0x3] %vm97, %v179
  %v182 = vpack.c.bf16 %v174, %v174
  %v184 = vrot.slane %v182, 3
  %v187 = vsel %vm102, %v182, %v184
  %189 = vrot.lane.b32.xlu0 %v187, 32
  %v190 = vpop.permute.xlu0 %189
  %192 = vst.msk [vmem:[%s116] sm:$0x1] %vm110, %v190
  %s193 = scalar_lea.vmem %s2, 8
  %194 = vst.msk [vmem:[%s193] sm:$0x1] %vm110, %v190
  %s195 = scalar_lea.vmem %s0, 1
  %v196 = vld [vmem:[%s195] sm:$0x1]
  %v197 = vunpack.c.l.bf16 %v196
  %v198 = vld [vmem:[#allocation2] sm:$0x1]
  %v200 = vsel %vm46, %v198, 0
  %202 = vmatpush.bf16.msra.mxu0 0
  %203 = vmatpush.bf16.msra.mxu0 0
  %204 = vmatpush.bf16.msra.mxu0 0
  %205 = vmatpush.bf16.msra.mxu0 0
  %206 = vmatpush.bf16.msra.mxu0 0
  %207 = vmatpush.bf16.msra.mxu0 0
  %208 = vmatpush.bf16.msra.mxu0 %v43
  %209 = vmatpush.bf16.msra.mxu0 %v42
  %210 = vmatmul.bf16.gmra.mxu0 %v200
  %v211 = vpop.f32.mrf.mxu0
  %v212 = vadd.f32 0.0, %v211
  %v213 = vpop.f32.mrf.mxu0
  %214 = vdwg.mxu0
  %v215 = vadd.f32 %v197, %v212
  %v216 = vmul.f32 %v215, 0.5
  %v217 = vtanh.pop %v216
  %v218 = vmul.f32 %v217, 0.5
  %v219 = vadd.f32 %v218, 0.5
  %v220 = vtanh.pop %v215
  %v221 = vld [vmem:[#allocation3] sm:$0x3]
  %223 = vrot.lane.b32.xlu0 %v221, 32
  %v224 = vpop.permute.xlu0 %223
  %v226 = vmul.f32 %v219, %v224
  %228 = vrot.lane.b32.xlu0 %v220, 64
  %v229 = vpop.permute.xlu0 %228
  %v231 = vmul.f32 %v219, %v229
  %233 = vrot.lane.b32.xlu0 %v231, 32
  %v234 = vpop.permute.xlu0 %233
  %v236 = vadd.f32 %v226, %v234
  %v237 = vtanh.pop %v236
  %239 = vrot.lane.b32.xlu0 %v237, 64
  %v240 = vpop.permute.xlu0 %239
  %v242 = vmul.f32 %v219, %v240
  %244 = vst [vmem:[#allocation1] ss:$4 sm:$0xff] %v236
  %v245 = vld.sshfl [vmem:[#allocation1] sm:$0xff pattern:$0x73625140]
  %246 = vrot.lane.b32.xlu0 %v245, 96
  %v247 = vpop.permute.xlu0 %246
  %249 = vst.msk [vmem:[#allocation3] sm:$0x3] %vm97, %v247
  %v250 = vpack.c.bf16 %v242, %v242
  %v252 = vrot.slane %v250, 3
  %v255 = vsel %vm102, %v250, %v252
  %257 = vrot.lane.b32.xlu0 %v255, 32
  %v258 = vpop.permute.xlu0 %257
  %260 = vst.msk [vmem:[#allocation2] sm:$0x1] %vm110, %v258
  %s261 = scalar_lea.vmem %s2, 1
  %262 = vst.msk [vmem:[%s261] sm:$0x1] %vm110, %v258
  %s263 = scalar_lea.vmem %s0, 9
  %v264 = vld [vmem:[%s263] sm:$0x1]
  %v265 = vunpack.c.l.bf16 %v264
  %v266 = vld [vmem:[%s116] sm:$0x1]
  %v268 = vsel %vm46, %v266, 0
  %270 = vmatpush.bf16.msra.mxu0 0
  %271 = vmatpush.bf16.msra.mxu0 0
  %272 = vmatpush.bf16.msra.mxu0 0
  %273 = vmatpush.bf16.msra.mxu0 0
  %274 = vmatpush.bf16.msra.mxu0 0
  %275 = vmatpush.bf16.msra.mxu0 0
  %276 = vmatpush.bf16.msra.mxu0 %v127
  %277 = vmatpush.bf16.msra.mxu0 %v126
  %278 = vmatmul.bf16.gmra.mxu0 %v268
  %v279 = vpop.f32.mrf.mxu0
  %v280 = vadd.f32 0.0, %v279
  %v281 = vpop.f32.mrf.mxu0
  %282 = vdwg.mxu0
  %v283 = vadd.f32 %v265, %v280
  %v284 = vmul.f32 %v283, 0.5
  %v285 = vtanh.pop %v284
  %v286 = vmul.f32 %v285, 0.5
  %v287 = vadd.f32 %v286, 0.5
  %v288 = vtanh.pop %v283
  %v289 = vld [vmem:[%s152] sm:$0x3]
  %291 = vrot.lane.b32.xlu0 %v289, 32
  %v292 = vpop.permute.xlu0 %291
  %v294 = vmul.f32 %v287, %v292
  %296 = vrot.lane.b32.xlu0 %v288, 64
  %v297 = vpop.permute.xlu0 %296
  %v299 = vmul.f32 %v287, %v297
  %301 = vrot.lane.b32.xlu0 %v299, 32
  %v302 = vpop.permute.xlu0 %301
  %v304 = vadd.f32 %v294, %v302
  %v305 = vtanh.pop %v304
  %307 = vrot.lane.b32.xlu0 %v305, 64
  %v308 = vpop.permute.xlu0 %307
  %v310 = vmul.f32 %v287, %v308
  %312 = vst [vmem:[#allocation1] ss:$4 sm:$0xff] %v304
  %v313 = vld.sshfl [vmem:[#allocation1] sm:$0xff pattern:$0x73625140]
  %314 = vrot.lane.b32.xlu0 %v313, 96
  %v315 = vpop.permute.xlu0 %314
  %317 = vst.msk [vmem:[%s152] sm:$0x3] %vm97, %v315
  %v318 = vpack.c.bf16 %v310, %v310
  %v320 = vrot.slane %v318, 3
  %v323 = vsel %vm102, %v318, %v320
  %325 = vrot.lane.b32.xlu0 %v323, 32
  %v326 = vpop.permute.xlu0 %325
  %328 = vst.msk [vmem:[%s116] sm:$0x1] %vm110, %v326
  %s329 = scalar_lea.vmem %s2, 9
  %330 = vst.msk [vmem:[%s329] sm:$0x1] %vm110, %v326
  %s331 = scalar_lea.vmem %s0, 2
  %v332 = vld [vmem:[%s331] sm:$0x1]
  %v333 = vunpack.c.l.bf16 %v332
  %v334 = vld [vmem:[#allocation2] sm:$0x1]
  %v336 = vsel %vm46, %v334, 0
  %338 = vmatpush.bf16.msra.mxu0 0
  %339 = vmatpush.bf16.msra.mxu0 0
  %340 = vmatpush.bf16.msra.mxu0 0
  %341 = vmatpush.bf16.msra.mxu0 0
  %342 = vmatpush.bf16.msra.mxu0 0
  %343 = vmatpush.bf16.msra.mxu0 0
  %344 = vmatpush.bf16.msra.mxu0 %v43
  %345 = vmatpush.bf16.msra.mxu0 %v42
  %346 = vmatmul.bf16.gmra.mxu0 %v336
  %v347 = vpop.f32.mrf.mxu0
  %v348 = vadd.f32 0.0, %v347
  %v349 = vpop.f32.mrf.mxu0
  %350 = vdwg.mxu0
  %v351 = vadd.f32 %v333, %v348
  %v352 = vmul.f32 %v351, 0.5
  %v353 = vtanh.pop %v352
  %v354 = vmul.f32 %v353, 0.5
  %v355 = vadd.f32 %v354, 0.5
  %v356 = vtanh.pop %v351
  %v357 = vld [vmem:[#allocation3] sm:$0x3]
  %359 = vrot.lane.b32.xlu0 %v357, 32
  %v360 = vpop.permute.xlu0 %359
  %v362 = vmul.f32 %v355, %v360
  %364 = vrot.lane.b32.xlu0 %v356, 64
  %v365 = vpop.permute.xlu0 %364
  %v367 = vmul.f32 %v355, %v365
  %369 = vrot.lane.b32.xlu0 %v367, 32
  %v370 = vpop.permute.xlu0 %369
  %v372 = vadd.f32 %v362, %v370
  %v373 = vtanh.pop %v372
  %375 = vrot.lane.b32.xlu0 %v373, 64
  %v376 = vpop.permute.xlu0 %375
  %v378 = vmul.f32 %v355, %v376
  %380 = vst [vmem:[#allocation1] ss:$4 sm:$0xff] %v372
  %v381 = vld.sshfl [vmem:[#allocation1] sm:$0xff pattern:$0x73625140]
  %382 = vrot.lane.b32.xlu0 %v381, 96
  %v383 = vpop.permute.xlu0 %382
  %385 = vst.msk [vmem:[#allocation3] sm:$0x3] %vm97, %v383
  %v386 = vpack.c.bf16 %v378, %v378
  %v388 = vrot.slane %v386, 3
  %v391 = vsel %vm102, %v386, %v388
  %393 = vrot.lane.b32.xlu0 %v391, 32
  %v394 = vpop.permute.xlu0 %393
  %396 = vst.msk [vmem:[#allocation2] sm:$0x1] %vm110, %v394
  %s397 = scalar_lea.vmem %s2, 2
  %398 = vst.msk [vmem:[%s397] sm:$0x1] %vm110, %v394
  %s399 = scalar_lea.vmem %s0, 10
  %v400 = vld [vmem:[%s399] sm:$0x1]
  %v401 = vunpack.c.l.bf16 %v400
  %v402 = vld [vmem:[%s116] sm:$0x1]
  %v404 = vsel %vm46, %v402, 0
  %406 = vmatpush.bf16.msra.mxu0 0
  %407 = vmatpush.bf16.msra.mxu0 0
  %408 = vmatpush.bf16.msra.mxu0 0
  %409 = vmatpush.bf16.msra.mxu0 0
  %410 = vmatpush.bf16.msra.mxu0 0
  %411 = vmatpush.bf16.msra.mxu0 0
  %412 = vmatpush.bf16.msra.mxu0 %v127
  %413 = vmatpush.bf16.msra.mxu0 %v126
  %414 = vmatmul.bf16.gmra.mxu0 %v404
  %v415 = vpop.f32.mrf.mxu0
  %v416 = vadd.f32 0.0, %v415
  %v417 = vpop.f32.mrf.mxu0
  %418 = vdwg.mxu0
  %v419 = vadd.f32 %v401, %v416
  %v420 = vmul.f32 %v419, 0.5
  %v421 = vtanh.pop %v420
  %v422 = vmul.f32 %v421, 0.5
  %v423 = vadd.f32 %v422, 0.5
  %v424 = vtanh.pop %v419
  %v425 = vld [vmem:[%s152] sm:$0x3]
  %427 = vrot.lane.b32.xlu0 %v425, 32
  %v428 = vpop.permute.xlu0 %427
  %v430 = vmul.f32 %v423, %v428
  %432 = vrot.lane.b32.xlu0 %v424, 64
  %v433 = vpop.permute.xlu0 %432
  %v435 = vmul.f32 %v423, %v433
  %437 = vrot.lane.b32.xlu0 %v435, 32
  %v438 = vpop.permute.xlu0 %437
  %v440 = vadd.f32 %v430, %v438
  %v441 = vtanh.pop %v440
  %443 = vrot.lane.b32.xlu0 %v441, 64
  %v444 = vpop.permute.xlu0 %443
  %v446 = vmul.f32 %v423, %v444
  %448 = vst [vmem:[#allocation1] ss:$4 sm:$0xff] %v440
  %v449 = vld.sshfl [vmem:[#allocation1] sm:$0xff pattern:$0x73625140]
  %450 = vrot.lane.b32.xlu0 %v449, 96
  %v451 = vpop.permute.xlu0 %450
  %453 = vst.msk [vmem:[%s152] sm:$0x3] %vm97, %v451
  %v454 = vpack.c.bf16 %v446, %v446
  %v456 = vrot.slane %v454, 3
  %v459 = vsel %vm102, %v454, %v456
  %461 = vrot.lane.b32.xlu0 %v459, 32
  %v462 = vpop.permute.xlu0 %461
  %464 = vst.msk [vmem:[%s116] sm:$0x1] %vm110, %v462
  %s465 = scalar_lea.vmem %s2, 10
  %466 = vst.msk [vmem:[%s465] sm:$0x1] %vm110, %v462
  %s467 = scalar_lea.vmem %s0, 3
  %v468 = vld [vmem:[%s467] sm:$0x1]
  %v469 = vunpack.c.l.bf16 %v468
  %v470 = vld [vmem:[#allocation2] sm:$0x1]
  %v472 = vsel %vm46, %v470, 0
  %474 = vmatpush.bf16.msra.mxu0 0
  %475 = vmatpush.bf16.msra.mxu0 0
  %476 = vmatpush.bf16.msra.mxu0 0
  %477 = vmatpush.bf16.msra.mxu0 0
  %478 = vmatpush.bf16.msra.mxu0 0
  %479 = vmatpush.bf16.msra.mxu0 0
  %480 = vmatpush.bf16.msra.mxu0 %v43
  %481 = vmatpush.bf16.msra.mxu0 %v42
  %482 = vmatmul.bf16.gmra.mxu0 %v472
  %v483 = vpop.f32.mrf.mxu0
  %v484 = vadd.f32 0.0, %v483
  %v485 = vpop.f32.mrf.mxu0
  %486 = vdwg.mxu0
  %v487 = vadd.f32 %v469, %v484
  %v488 = vmul.f32 %v487, 0.5
  %v489 = vtanh.pop %v488
  %v490 = vmul.f32 %v489, 0.5
  %v491 = vadd.f32 %v490, 0.5
  %v492 = vtanh.pop %v487
  %v493 = vld [vmem:[#allocation3] sm:$0x3]
  %495 = vrot.lane.b32.xlu0 %v493, 32
  %v496 = vpop.permute.xlu0 %495
  %v498 = vmul.f32 %v491, %v496
  %500 = vrot.lane.b32.xlu0 %v492, 64
  %v501 = vpop.permute.xlu0 %500
  %v503 = vmul.f32 %v491, %v501
  %505 = vrot.lane.b32.xlu0 %v503, 32
  %v506 = vpop.permute.xlu0 %505
  %v508 = vadd.f32 %v498, %v506
  %v509 = vtanh.pop %v508
  %511 = vrot.lane.b32.xlu0 %v509, 64
  %v512 = vpop.permute.xlu0 %511
  %v514 = vmul.f32 %v491, %v512
  %516 = vst [vmem:[#allocation1] ss:$4 sm:$0xff] %v508
  %v517 = vld.sshfl [vmem:[#allocation1] sm:$0xff pattern:$0x73625140]
  %518 = vrot.lane.b32.xlu0 %v517, 96
  %v519 = vpop.permute.xlu0 %518
  %521 = vst.msk [vmem:[#allocation3] sm:$0x3] %vm97, %v519
  %v522 = vpack.c.bf16 %v514, %v514
  %v524 = vrot.slane %v522, 3
  %v527 = vsel %vm102, %v522, %v524
  %529 = vrot.lane.b32.xlu0 %v527, 32
  %v530 = vpop.permute.xlu0 %529
  %532 = vst.msk [vmem:[#allocation2] sm:$0x1] %vm110, %v530
  %s533 = scalar_lea.vmem %s2, 3
  %534 = vst.msk [vmem:[%s533] sm:$0x1] %vm110, %v530
  %s535 = scalar_lea.vmem %s0, 11
  %v536 = vld [vmem:[%s535] sm:$0x1]
  %v537 = vunpack.c.l.bf16 %v536
  %v538 = vld [vmem:[%s116] sm:$0x1]
  %v540 = vsel %vm46, %v538, 0
  %542 = vmatpush.bf16.msra.mxu0 0
  %543 = vmatpush.bf16.msra.mxu0 0
  %544 = vmatpush.bf16.msra.mxu0 0
  %545 = vmatpush.bf16.msra.mxu0 0
  %546 = vmatpush.bf16.msra.mxu0 0
  %547 = vmatpush.bf16.msra.mxu0 0
  %548 = vmatpush.bf16.msra.mxu0 %v127
  %549 = vmatpush.bf16.msra.mxu0 %v126
  %550 = vmatmul.bf16.gmra.mxu0 %v540
  %v551 = vpop.f32.mrf.mxu0
  %v552 = vadd.f32 0.0, %v551
  %v553 = vpop.f32.mrf.mxu0
  %554 = vdwg.mxu0
  %v555 = vadd.f32 %v537, %v552
  %v556 = vmul.f32 %v555, 0.5
  %v557 = vtanh.pop %v556
  %v558 = vmul.f32 %v557, 0.5
  %v559 = vadd.f32 %v558, 0.5
  %v560 = vtanh.pop %v555
  %v561 = vld [vmem:[%s152] sm:$0x3]
  %563 = vrot.lane.b32.xlu0 %v561, 32
  %v564 = vpop.permute.xlu0 %563
  %v566 = vmul.f32 %v559, %v564
  %568 = vrot.lane.b32.xlu0 %v560, 64
  %v569 = vpop.permute.xlu0 %568
  %v571 = vmul.f32 %v559, %v569
  %573 = vrot.lane.b32.xlu0 %v571, 32
  %v574 = vpop.permute.xlu0 %573
  %v576 = vadd.f32 %v566, %v574
  %v577 = vtanh.pop %v576
  %579 = vrot.lane.b32.xlu0 %v577, 64
  %v580 = vpop.permute.xlu0 %579
  %v582 = vmul.f32 %v559, %v580
  %584 = vst [vmem:[#allocation1] ss:$4 sm:$0xff] %v576
  %v585 = vld.sshfl [vmem:[#allocation1] sm:$0xff pattern:$0x73625140]
  %586 = vrot.lane.b32.xlu0 %v585, 96
  %v587 = vpop.permute.xlu0 %586
  %589 = vst.msk [vmem:[%s152] sm:$0x3] %vm97, %v587
  %v590 = vpack.c.bf16 %v582, %v582
  %v592 = vrot.slane %v590, 3
  %v595 = vsel %vm102, %v590, %v592
  %597 = vrot.lane.b32.xlu0 %v595, 32
  %v598 = vpop.permute.xlu0 %597
  %600 = vst.msk [vmem:[%s116] sm:$0x1] %vm110, %v598
  %s601 = scalar_lea.vmem %s2, 11
  %602 = vst.msk [vmem:[%s601] sm:$0x1] %vm110, %v598
  %s603 = scalar_lea.vmem %s0, 4
  %v604 = vld [vmem:[%s603] sm:$0x1]
  %v605 = vunpack.c.l.bf16 %v604
  %v606 = vld [vmem:[#allocation2] sm:$0x1]
  %v608 = vsel %vm46, %v606, 0
  %610 = vmatpush.bf16.msra.mxu0 0
  %611 = vmatpush.bf16.msra.mxu0 0
  %612 = vmatpush.bf16.msra.mxu0 0
  %613 = vmatpush.bf16.msra.mxu0 0
  %614 = vmatpush.bf16.msra.mxu0 0
  %615 = vmatpush.bf16.msra.mxu0 0
  %616 = vmatpush.bf16.msra.mxu0 %v43
  %617 = vmatpush.bf16.msra.mxu0 %v42
  %618 = vmatmul.bf16.gmra.mxu0 %v608
  %v619 = vpop.f32.mrf.mxu0
  %v620 = vadd.f32 0.0, %v619
  %v621 = vpop.f32.mrf.mxu0
  %622 = vdwg.mxu0
  %v623 = vadd.f32 %v605, %v620
  %v624 = vmul.f32 %v623, 0.5
  %v625 = vtanh.pop %v624
  %v626 = vmul.f32 %v625, 0.5
  %v627 = vadd.f32 %v626, 0.5
  %v628 = vtanh.pop %v623
  %v629 = vld [vmem:[#allocation3] sm:$0x3]
  %631 = vrot.lane.b32.xlu0 %v629, 32
  %v632 = vpop.permute.xlu0 %631
  %v634 = vmul.f32 %v627, %v632
  %636 = vrot.lane.b32.xlu0 %v628, 64
  %v637 = vpop.permute.xlu0 %636
  %v639 = vmul.f32 %v627, %v637
  %641 = vrot.lane.b32.xlu0 %v639, 32
  %v642 = vpop.permute.xlu0 %641
  %v644 = vadd.f32 %v634, %v642
  %v645 = vtanh.pop %v644
  %647 = vrot.lane.b32.xlu0 %v645, 64
  %v648 = vpop.permute.xlu0 %647
  %v650 = vmul.f32 %v627, %v648
  %652 = vst [vmem:[#allocation1] ss:$4 sm:$0xff] %v644
  %v653 = vld.sshfl [vmem:[#allocation1] sm:$0xff pattern:$0x73625140]
  %654 = vrot.lane.b32.xlu0 %v653, 96
  %v655 = vpop.permute.xlu0 %654
  %657 = vst.msk [vmem:[#allocation3] sm:$0x3] %vm97, %v655
  %v658 = vpack.c.bf16 %v650, %v650
  %v660 = vrot.slane %v658, 3
  %v663 = vsel %vm102, %v658, %v660
  %665 = vrot.lane.b32.xlu0 %v663, 32
  %v666 = vpop.permute.xlu0 %665
  %668 = vst.msk [vmem:[#allocation2] sm:$0x1] %vm110, %v666
  %s669 = scalar_lea.vmem %s2, 4
  %670 = vst.msk [vmem:[%s669] sm:$0x1] %vm110, %v666
  %s671 = scalar_lea.vmem %s0, 12
  %v672 = vld [vmem:[%s671] sm:$0x1]
  %v673 = vunpack.c.l.bf16 %v672
  %v674 = vld [vmem:[%s116] sm:$0x1]
  %v676 = vsel %vm46, %v674, 0
  %678 = vmatpush.bf16.msra.mxu0 0
  %679 = vmatpush.bf16.msra.mxu0 0
  %680 = vmatpush.bf16.msra.mxu0 0
  %681 = vmatpush.bf16.msra.mxu0 0
  %682 = vmatpush.bf16.msra.mxu0 0
  %683 = vmatpush.bf16.msra.mxu0 0
  %684 = vmatpush.bf16.msra.mxu0 %v127
  %685 = vmatpush.bf16.msra.mxu0 %v126
  %686 = vmatmul.bf16.gmra.mxu0 %v676
  %v687 = vpop.f32.mrf.mxu0
  %v688 = vadd.f32 0.0, %v687
  %v689 = vpop.f32.mrf.mxu0
  %690 = vdwg.mxu0
  %v691 = vadd.f32 %v673, %v688
  %v692 = vmul.f32 %v691, 0.5
  %v693 = vtanh.pop %v692
  %v694 = vmul.f32 %v693, 0.5
  %v695 = vadd.f32 %v694, 0.5
  %v696 = vtanh.pop %v691
  %v697 = vld [vmem:[%s152] sm:$0x3]
  %699 = vrot.lane.b32.xlu0 %v697, 32
  %v700 = vpop.permute.xlu0 %699
  %v702 = vmul.f32 %v695, %v700
  %704 = vrot.lane.b32.xlu0 %v696, 64
  %v705 = vpop.permute.xlu0 %704
  %v707 = vmul.f32 %v695, %v705
  %709 = vrot.lane.b32.xlu0 %v707, 32
  %v710 = vpop.permute.xlu0 %709
  %v712 = vadd.f32 %v702, %v710
  %v713 = vtanh.pop %v712
  %715 = vrot.lane.b32.xlu0 %v713, 64
  %v716 = vpop.permute.xlu0 %715
  %v718 = vmul.f32 %v695, %v716
  %720 = vst [vmem:[#allocation1] ss:$4 sm:$0xff] %v712
  %v721 = vld.sshfl [vmem:[#allocation1] sm:$0xff pattern:$0x73625140]
  %722 = vrot.lane.b32.xlu0 %v721, 96
  %v723 = vpop.permute.xlu0 %722
  %725 = vst.msk [vmem:[%s152] sm:$0x3] %vm97, %v723
  %v726 = vpack.c.bf16 %v718, %v718
  %v728 = vrot.slane %v726, 3
  %v731 = vsel %vm102, %v726, %v728
  %733 = vrot.lane.b32.xlu0 %v731, 32
  %v734 = vpop.permute.xlu0 %733
  %736 = vst.msk [vmem:[%s116] sm:$0x1] %vm110, %v734
  %s737 = scalar_lea.vmem %s2, 12
  %738 = vst.msk [vmem:[%s737] sm:$0x1] %vm110, %v734
  %s739 = scalar_lea.vmem %s0, 5
  %v740 = vld [vmem:[%s739] sm:$0x1]
  %v741 = vunpack.c.l.bf16 %v740
  %v742 = vld [vmem:[#allocation2] sm:$0x1]
  %v744 = vsel %vm46, %v742, 0
  %746 = vmatpush.bf16.msra.mxu0 0
  %747 = vmatpush.bf16.msra.mxu0 0
  %748 = vmatpush.bf16.msra.mxu0 0
  %749 = vmatpush.bf16.msra.mxu0 0
  %750 = vmatpush.bf16.msra.mxu0 0
  %751 = vmatpush.bf16.msra.mxu0 0
  %752 = vmatpush.bf16.msra.mxu0 %v43
  %753 = vmatpush.bf16.msra.mxu0 %v42
  %754 = vmatmul.bf16.gmra.mxu0 %v744
  %v755 = vpop.f32.mrf.mxu0
  %v756 = vadd.f32 0.0, %v755
  %v757 = vpop.f32.mrf.mxu0
  %758 = vdwg.mxu0
  %v759 = vadd.f32 %v741, %v756
  %v760 = vmul.f32 %v759, 0.5
  %v761 = vtanh.pop %v760
  %v762 = vmul.f32 %v761, 0.5
  %v763 = vadd.f32 %v762, 0.5
  %v764 = vtanh.pop %v759
  %v765 = vld [vmem:[#allocation3] sm:$0x3]
  %767 = vrot.lane.b32.xlu0 %v765, 32
  %v768 = vpop.permute.xlu0 %767
  %v770 = vmul.f32 %v763, %v768
  %772 = vrot.lane.b32.xlu0 %v764, 64
  %v773 = vpop.permute.xlu0 %772
  %v775 = vmul.f32 %v763, %v773
  %777 = vrot.lane.b32.xlu0 %v775, 32
  %v778 = vpop.permute.xlu0 %777
  %v780 = vadd.f32 %v770, %v778
  %v781 = vtanh.pop %v780
  %783 = vrot.lane.b32.xlu0 %v781, 64
  %v784 = vpop.permute.xlu0 %783
  %v786 = vmul.f32 %v763, %v784
  %788 = vst [vmem:[#allocation1] ss:$4 sm:$0xff] %v780
  %v789 = vld.sshfl [vmem:[#allocation1] sm:$0xff pattern:$0x73625140]
  %790 = vrot.lane.b32.xlu0 %v789, 96
  %v791 = vpop.permute.xlu0 %790
  %793 = vst.msk [vmem:[#allocation3] sm:$0x3] %vm97, %v791
  %v794 = vpack.c.bf16 %v786, %v786
  %v796 = vrot.slane %v794, 3
  %v799 = vsel %vm102, %v794, %v796
  %801 = vrot.lane.b32.xlu0 %v799, 32
  %v802 = vpop.permute.xlu0 %801
  %804 = vst.msk [vmem:[#allocation2] sm:$0x1] %vm110, %v802
  %s805 = scalar_lea.vmem %s2, 5
  %806 = vst.msk [vmem:[%s805] sm:$0x1] %vm110, %v802
  %s807 = scalar_lea.vmem %s0, 13
  %v808 = vld [vmem:[%s807] sm:$0x1]
  %v809 = vunpack.c.l.bf16 %v808
  %v810 = vld [vmem:[%s116] sm:$0x1]
  %v812 = vsel %vm46, %v810, 0
  %814 = vmatpush.bf16.msra.mxu0 0
  %815 = vmatpush.bf16.msra.mxu0 0
  %816 = vmatpush.bf16.msra.mxu0 0
  %817 = vmatpush.bf16.msra.mxu0 0
  %818 = vmatpush.bf16.msra.mxu0 0
  %819 = vmatpush.bf16.msra.mxu0 0
  %820 = vmatpush.bf16.msra.mxu0 %v127
  %821 = vmatpush.bf16.msra.mxu0 %v126
  %822 = vmatmul.bf16.gmra.mxu0 %v812
  %v823 = vpop.f32.mrf.mxu0
  %v824 = vadd.f32 0.0, %v823
  %v825 = vpop.f32.mrf.mxu0
  %826 = vdwg.mxu0
  %v827 = vadd.f32 %v809, %v824
  %v828 = vmul.f32 %v827, 0.5
  %v829 = vtanh.pop %v828
  %v830 = vmul.f32 %v829, 0.5
  %v831 = vadd.f32 %v830, 0.5
  %v832 = vtanh.pop %v827
  %v833 = vld [vmem:[%s152] sm:$0x3]
  %835 = vrot.lane.b32.xlu0 %v833, 32
  %v836 = vpop.permute.xlu0 %835
  %v838 = vmul.f32 %v831, %v836
  %840 = vrot.lane.b32.xlu0 %v832, 64
  %v841 = vpop.permute.xlu0 %840
  %v843 = vmul.f32 %v831, %v841
  %845 = vrot.lane.b32.xlu0 %v843, 32
  %v846 = vpop.permute.xlu0 %845
  %v848 = vadd.f32 %v838, %v846
  %v849 = vtanh.pop %v848
  %851 = vrot.lane.b32.xlu0 %v849, 64
  %v852 = vpop.permute.xlu0 %851
  %v854 = vmul.f32 %v831, %v852
  %856 = vst [vmem:[#allocation1] ss:$4 sm:$0xff] %v848
  %v857 = vld.sshfl [vmem:[#allocation1] sm:$0xff pattern:$0x73625140]
  %858 = vrot.lane.b32.xlu0 %v857, 96
  %v859 = vpop.permute.xlu0 %858
  %861 = vst.msk [vmem:[%s152] sm:$0x3] %vm97, %v859
  %v862 = vpack.c.bf16 %v854, %v854
  %v864 = vrot.slane %v862, 3
  %v867 = vsel %vm102, %v862, %v864
  %869 = vrot.lane.b32.xlu0 %v867, 32
  %v870 = vpop.permute.xlu0 %869
  %872 = vst.msk [vmem:[%s116] sm:$0x1] %vm110, %v870
  %s873 = scalar_lea.vmem %s2, 13
  %874 = vst.msk [vmem:[%s873] sm:$0x1] %vm110, %v870
  %s875 = scalar_lea.vmem %s0, 6
  %v876 = vld [vmem:[%s875] sm:$0x1]
  %v877 = vunpack.c.l.bf16 %v876
  %v878 = vld [vmem:[#allocation2] sm:$0x1]
  %v880 = vsel %vm46, %v878, 0
  %882 = vmatpush.bf16.msra.mxu0 0
  %883 = vmatpush.bf16.msra.mxu0 0
  %884 = vmatpush.bf16.msra.mxu0 0
  %885 = vmatpush.bf16.msra.mxu0 0
  %886 = vmatpush.bf16.msra.mxu0 0
  %887 = vmatpush.bf16.msra.mxu0 0
  %888 = vmatpush.bf16.msra.mxu0 %v43
  %889 = vmatpush.bf16.msra.mxu0 %v42
  %890 = vmatmul.bf16.gmra.mxu0 %v880
  %v891 = vpop.f32.mrf.mxu0
  %v892 = vadd.f32 0.0, %v891
  %v893 = vpop.f32.mrf.mxu0
  %894 = vdwg.mxu0
  %v895 = vadd.f32 %v877, %v892
  %v896 = vmul.f32 %v895, 0.5
  %v897 = vtanh.pop %v896
  %v898 = vmul.f32 %v897, 0.5
  %v899 = vadd.f32 %v898, 0.5
  %v900 = vtanh.pop %v895
  %v901 = vld [vmem:[#allocation3] sm:$0x3]
  %903 = vrot.lane.b32.xlu0 %v901, 32
  %v904 = vpop.permute.xlu0 %903
  %v906 = vmul.f32 %v899, %v904
  %908 = vrot.lane.b32.xlu0 %v900, 64
  %v909 = vpop.permute.xlu0 %908
  %v911 = vmul.f32 %v899, %v909
  %913 = vrot.lane.b32.xlu0 %v911, 32
  %v914 = vpop.permute.xlu0 %913
  %v916 = vadd.f32 %v906, %v914
  %v917 = vtanh.pop %v916
  %919 = vrot.lane.b32.xlu0 %v917, 64
  %v920 = vpop.permute.xlu0 %919
  %v922 = vmul.f32 %v899, %v920
  %924 = vst [vmem:[#allocation1] ss:$4 sm:$0xff] %v916
  %v925 = vld.sshfl [vmem:[#allocation1] sm:$0xff pattern:$0x73625140]
  %926 = vrot.lane.b32.xlu0 %v925, 96
  %v927 = vpop.permute.xlu0 %926
  %929 = vst.msk [vmem:[#allocation3] sm:$0x3] %vm97, %v927
  %v930 = vpack.c.bf16 %v922, %v922
  %v932 = vrot.slane %v930, 3
  %v935 = vsel %vm102, %v930, %v932
  %937 = vrot.lane.b32.xlu0 %v935, 32
  %v938 = vpop.permute.xlu0 %937
  %940 = vst.msk [vmem:[#allocation2] sm:$0x1] %vm110, %v938
  %s941 = scalar_lea.vmem %s2, 6
  %942 = vst.msk [vmem:[%s941] sm:$0x1] %vm110, %v938
  %s943 = scalar_lea.vmem %s0, 14
  %v944 = vld [vmem:[%s943] sm:$0x1]
  %v945 = vunpack.c.l.bf16 %v944
  %v946 = vld [vmem:[%s116] sm:$0x1]
  %v948 = vsel %vm46, %v946, 0
  %950 = vmatpush.bf16.msra.mxu0 0
  %951 = vmatpush.bf16.msra.mxu0 0
  %952 = vmatpush.bf16.msra.mxu0 0
  %953 = vmatpush.bf16.msra.mxu0 0
  %954 = vmatpush.bf16.msra.mxu0 0
  %955 = vmatpush.bf16.msra.mxu0 0
  %956 = vmatpush.bf16.msra.mxu0 %v127
  %957 = vmatpush.bf16.msra.mxu0 %v126
  %958 = vmatmul.bf16.gmra.mxu0 %v948
  %v959 = vpop.f32.mrf.mxu0
  %v960 = vadd.f32 0.0, %v959
  %v961 = vpop.f32.mrf.mxu0
  %962 = vdwg.mxu0
  %v963 = vadd.f32 %v945, %v960
  %v964 = vmul.f32 %v963, 0.5
  %v965 = vtanh.pop %v964
  %v966 = vmul.f32 %v965, 0.5
  %v967 = vadd.f32 %v966, 0.5
  %v968 = vtanh.pop %v963
  %v969 = vld [vmem:[%s152] sm:$0x3]
  %971 = vrot.lane.b32.xlu0 %v969, 32
  %v972 = vpop.permute.xlu0 %971
  %v974 = vmul.f32 %v967, %v972
  %976 = vrot.lane.b32.xlu0 %v968, 64
  %v977 = vpop.permute.xlu0 %976
  %v979 = vmul.f32 %v967, %v977
  %981 = vrot.lane.b32.xlu0 %v979, 32
  %v982 = vpop.permute.xlu0 %981
  %v984 = vadd.f32 %v974, %v982
  %v985 = vtanh.pop %v984
  %987 = vrot.lane.b32.xlu0 %v985, 64
  %v988 = vpop.permute.xlu0 %987
  %v990 = vmul.f32 %v967, %v988
  %992 = vst [vmem:[#allocation1] ss:$4 sm:$0xff] %v984
  %v993 = vld.sshfl [vmem:[#allocation1] sm:$0xff pattern:$0x73625140]
  %994 = vrot.lane.b32.xlu0 %v993, 96
  %v995 = vpop.permute.xlu0 %994
  %997 = vst.msk [vmem:[%s152] sm:$0x3] %vm97, %v995
  %v998 = vpack.c.bf16 %v990, %v990
  %v1000 = vrot.slane %v998, 3
  %v1003 = vsel %vm102, %v998, %v1000
  %1005 = vrot.lane.b32.xlu0 %v1003, 32
  %v1006 = vpop.permute.xlu0 %1005
  %1008 = vst.msk [vmem:[%s116] sm:$0x1] %vm110, %v1006
  %s1009 = scalar_lea.vmem %s2, 14
  %1010 = vst.msk [vmem:[%s1009] sm:$0x1] %vm110, %v1006
  %s1011 = scalar_lea.vmem %s0, 7
  %v1012 = vld [vmem:[%s1011] sm:$0x1]
  %v1013 = vunpack.c.l.bf16 %v1012
  %v1014 = vld [vmem:[#allocation2] sm:$0x1]
  %v1016 = vsel %vm46, %v1014, 0
  %1018 = vmatpush.bf16.msra.mxu0 0
  %1019 = vmatpush.bf16.msra.mxu0 0
  %1020 = vmatpush.bf16.msra.mxu0 0
  %1021 = vmatpush.bf16.msra.mxu0 0
  %1022 = vmatpush.bf16.msra.mxu0 0
  %1023 = vmatpush.bf16.msra.mxu0 0
  %1024 = vmatpush.bf16.msra.mxu0 %v43
  %1025 = vmatpush.bf16.msra.mxu0 %v42
  %1026 = vmatmul.bf16.gmra.mxu0 %v1016
  %v1027 = vpop.f32.mrf.mxu0
  %v1028 = vadd.f32 0.0, %v1027
  %v1029 = vpop.f32.mrf.mxu0
  %1030 = vdwg.mxu0
  %v1031 = vadd.f32 %v1013, %v1028
  %v1032 = vmul.f32 %v1031, 0.5
  %v1033 = vtanh.pop %v1032
  %v1034 = vmul.f32 %v1033, 0.5
  %v1035 = vadd.f32 %v1034, 0.5
  %v1036 = vtanh.pop %v1031
  %v1037 = vld [vmem:[#allocation3] sm:$0x3]
  %1039 = vrot.lane.b32.xlu0 %v1037, 32
  %v1040 = vpop.permute.xlu0 %1039
  %v1042 = vmul.f32 %v1035, %v1040
  %1044 = vrot.lane.b32.xlu0 %v1036, 64
  %v1045 = vpop.permute.xlu0 %1044
  %v1047 = vmul.f32 %v1035, %v1045
  %1049 = vrot.lane.b32.xlu0 %v1047, 32
  %v1050 = vpop.permute.xlu0 %1049
  %v1052 = vadd.f32 %v1042, %v1050
  %v1053 = vtanh.pop %v1052
  %1055 = vrot.lane.b32.xlu0 %v1053, 64
  %v1056 = vpop.permute.xlu0 %1055
  %v1058 = vmul.f32 %v1035, %v1056
  %1060 = vst [vmem:[#allocation1] ss:$4 sm:$0xff] %v1052
  %v1061 = vld.sshfl [vmem:[#allocation1] sm:$0xff pattern:$0x73625140]
  %1062 = vrot.lane.b32.xlu0 %v1061, 96
  %v1063 = vpop.permute.xlu0 %1062
  %1065 = vst.msk [vmem:[#allocation3] sm:$0x3] %vm97, %v1063
  %v1066 = vpack.c.bf16 %v1058, %v1058
  %v1068 = vrot.slane %v1066, 3
  %v1071 = vsel %vm102, %v1066, %v1068
  %1073 = vrot.lane.b32.xlu0 %v1071, 32
  %v1074 = vpop.permute.xlu0 %1073
  %1076 = vst.msk [vmem:[#allocation2] sm:$0x1] %vm110, %v1074
  %s1077 = scalar_lea.vmem %s2, 7
  %1078 = vst.msk [vmem:[%s1077] sm:$0x1] %vm110, %v1074
  %s1079 = scalar_lea.vmem %s0, 15
  %v1080 = vld [vmem:[%s1079] sm:$0x1]
  %v1081 = vunpack.c.l.bf16 %v1080
  %v1082 = vld [vmem:[%s116] sm:$0x1]
  %v1084 = vsel %vm46, %v1082, 0
  %1086 = vmatpush.bf16.msra.mxu0 0
  %1087 = vmatpush.bf16.msra.mxu0 0
  %1088 = vmatpush.bf16.msra.mxu0 0
  %1089 = vmatpush.bf16.msra.mxu0 0
  %1090 = vmatpush.bf16.msra.mxu0 0
  %1091 = vmatpush.bf16.msra.mxu0 0
  %1092 = vmatpush.bf16.msra.mxu0 %v127
  %1093 = vmatpush.bf16.msra.mxu0 %v126
  %1094 = vmatmul.bf16.gmra.mxu0 %v1084
  %v1095 = vpop.f32.mrf.mxu0
  %v1096 = vadd.f32 0.0, %v1095
  %v1097 = vpop.f32.mrf.mxu0
  %1098 = vdwg.mxu0
  %v1099 = vadd.f32 %v1081, %v1096
  %v1100 = vmul.f32 %v1099, 0.5
  %v1101 = vtanh.pop %v1100
  %v1102 = vmul.f32 %v1101, 0.5
  %v1103 = vadd.f32 %v1102, 0.5
  %v1104 = vtanh.pop %v1099
  %v1105 = vld [vmem:[%s152] sm:$0x3]
  %1107 = vrot.lane.b32.xlu0 %v1105, 32
  %v1108 = vpop.permute.xlu0 %1107
  %v1110 = vmul.f32 %v1103, %v1108
  %1112 = vrot.lane.b32.xlu0 %v1104, 64
  %v1113 = vpop.permute.xlu0 %1112
  %v1115 = vmul.f32 %v1103, %v1113
  %1117 = vrot.lane.b32.xlu0 %v1115, 32
  %v1118 = vpop.permute.xlu0 %1117
  %v1120 = vadd.f32 %v1110, %v1118
  %v1121 = vtanh.pop %v1120
  %1123 = vrot.lane.b32.xlu0 %v1121, 64
  %v1124 = vpop.permute.xlu0 %1123
  %v1126 = vmul.f32 %v1103, %v1124
  %1128 = vst [vmem:[#allocation1] ss:$4 sm:$0xff] %v1120
  %v1129 = vld.sshfl [vmem:[#allocation1] sm:$0xff pattern:$0x73625140]
  %1130 = vrot.lane.b32.xlu0 %v1129, 96
  %v1131 = vpop.permute.xlu0 %1130
  %1133 = vst.msk [vmem:[%s152] sm:$0x3] %vm97, %v1131
  %v1134 = vpack.c.bf16 %v1126, %v1126
  %v1136 = vrot.slane %v1134, 3
  %v1139 = vsel %vm102, %v1134, %v1136
  %1141 = vrot.lane.b32.xlu0 %v1139, 32
  %v1142 = vpop.permute.xlu0 %1141
  %1144 = vst.msk [vmem:[%s116] sm:$0x1] %vm110, %v1142
  %s1145 = scalar_lea.vmem %s2, 15
  %1146 = vst.msk [vmem:[%s1145] sm:$0x1] %vm110, %v1142
  // Predicated region
  $region14: #{_blstm_forward_impl.1} parent=0 // pred_check
    _
  $region15: #{_blstm_forward_impl.1} parent=0 // pred_check_branch
    %1148 = sbr.rel (0) target = $region17
  $region16: #{_blstm_forward_impl.1} parent=0 // pred_region
    _
  $region17: #{_blstm_forward_impl.1} parent=0 // pred_fallthru
    _
  // Predicated region
  $region18: #{_blstm_forward_impl.1} parent=0 // pred_check
    _
  $region19: #{_blstm_forward_impl.1} parent=0 // pred_check_branch
    %1150 = sbr.rel (0) target = $region21
  $region20: #{_blstm_forward_impl.1} parent=0 // pred_region
    _
  $region21: #{_blstm_forward_impl.1} parent=0 // pred_fallthru
    _

</llo_original>
